<compile_context>
chip_gen: v7x
topology: tpu7x:2x2x1
jax: 0.10.0
libtpu: 0.0.40
codegen_flags: <defaults>
</compile_context>

<pallas_src>
import functools

import numpy as np
import jax
import jax.numpy as jnp
from jax.experimental import pallas as pl
from jax.experimental.pallas import tpu as pltpu


# --------------------------------------------------------------------------
# Pallas kernels
# --------------------------------------------------------------------------
def _conv_mm_kernel(x_ref, w_ref, b_ref, o_ref, *, K, Wi, neg_slope):
    """Valid stride-1 KxK conv as K*K shifted 2-D MXU matmuls.

    x_ref : (P_in, Cin)    flattened zero-padded input, row-major over (H, W)
    w_ref : (K*K, Cin, TC) conv taps, tap index = dy*K + dx (BN pre-folded)
    b_ref : (1, TC)        bias (BN pre-folded)
    o_ref : (P_out, TC)    flattened output rows, P_out = H_out * Wi
    """
    p_out = o_ref.shape[0]
    acc = None
    for dy in range(K):
        for dx in range(K):
            shift = dy * Wi + dx
            t = jnp.dot(x_ref[shift:shift + p_out, :],
                        w_ref[dy * K + dx],
                        preferred_element_type=jnp.float32)
            acc = t if acc is None else acc + t
    y = acc + b_ref[0]
    if neg_slope is not None:
        y = jnp.where(y >= 0.0, y, neg_slope * y)
    o_ref[...] = y.astype(o_ref.dtype)


def _avgpool_mm_kernel(x_ref, m_ref, o_ref):
    """AvgPool2d(3, s=2, p=1, count_include_pad=False) as one MXU matmul.

    x_ref : (H*W, C)      one batch element, spatial flattened row-major
    m_ref : (Ho*Wo, H*W)  kron(P_h, P_w), rows already 1/count-normalised
    o_ref : (Ho*Wo, C)
    """
    o_ref[...] = jnp.dot(m_ref[...], x_ref[...],
                         preferred_element_type=jnp.float32).astype(o_ref.dtype)


# --------------------------------------------------------------------------
# Wrappers (layout glue + pallas_call plumbing)
# --------------------------------------------------------------------------
def conv4x4(x, w, b, *, stride, neg_slope):
    """torch.nn.Conv2d(Cin, Cout, 4, stride, padding=2) [+ LeakyReLU], NHWC."""
    N, H, W, Cin = x.shape
    Cout = w.shape[-1]
    Ho = (H + 4 - 4) // stride + 1
    Wo = (W + 4 - 4) // stride + 1

    if stride == 1:
        K = 4
        xin = jnp.pad(x, ((0, 0), (2, 2), (2, 2), (0, 0)))
        w_taps = w.reshape(16, Cin, Cout)
    else:  # stride == 2: space-to-depth -> stride-1 2x2 conv over 4*Cin channels
        K = 2
        eh, ew = (H + 4) % 2, (W + 4) % 2
        xp = jnp.pad(x, ((0, 0), (2, 2 + eh), (2, 2 + ew), (0, 0)))
        Hp, Wp = xp.shape[1], xp.shape[2]
        xin = xp.reshape(N, Hp // 2, 2, Wp // 2, 2, Cin)
        xin = xin.transpose(0, 1, 3, 2, 4, 5).reshape(N, Hp // 2, Wp // 2, 4 * Cin)
        w_taps = (w.reshape(2, 2, 2, 2, Cin, Cout)
                   .transpose(0, 2, 1, 3, 4, 5)
                   .reshape(4, 4 * Cin, Cout))

    Hi, Wi, Ce = xin.shape[1], xin.shape[2], xin.shape[3]
    Hk = Hi - K + 1                       # raw valid-conv output rows (>= Ho)
    # one extra zero row so every shifted flat window stays in bounds
    xin = jnp.pad(xin, ((0, 0), (0, 1), (0, 0), (0, 0)))
    x_flat = xin.reshape(N, (Hi + 1) * Wi, Ce)
    p_in = (Hi + 1) * Wi
    p_out = Hk * Wi                       # full-width accumulator rows

    TC = Cout if Cout <= 128 else 128     # lane tile (keeps VMEM blocks bounded)
    assert Cout % TC == 0
    grid = (N, Cout // TC)

    out = pl.pallas_call(
        functools.partial(_conv_mm_kernel, K=K, Wi=Wi, neg_slope=neg_slope),
        out_shape=jax.ShapeDtypeStruct((N, p_out, Cout), x.dtype),
        grid=grid,
        in_specs=[
            pl.BlockSpec((None, p_in, Ce), lambda n, c: (n, 0, 0)),
            pl.BlockSpec((K * K, Ce, TC), lambda n, c: (0, 0, c)),
            pl.BlockSpec((1, TC), lambda n, c: (0, c)),
        ],
        out_specs=pl.BlockSpec((None, p_out, TC), lambda n, c: (n, 0, c)),
        compiler_params=pltpu.CompilerParams(
            dimension_semantics=("parallel", "parallel")),
    )(x_flat, w_taps, b.reshape(1, Cout))

    # drop the K-1 garbage columns of the full-width accumulator and any
    # extra odd-size row, recovering exactly torch's output size.
    return out.reshape(N, Hk, Wi, Cout)[:, :Ho, :Wo, :]


def _pool_matrix_1d(n):
    """1-D averaging matrix for kernel 3 / stride 2 / pad 1, count_include_pad=False."""
    no = (n - 1) // 2 + 1
    p = np.zeros((no, n), np.float32)
    for o in range(no):
        cols = [c for c in (2 * o - 1, 2 * o, 2 * o + 1) if 0 <= c < n]
        p[o, cols] = 1.0 / len(cols)
    return p


def avgpool_3x3_s2(x):
    """torch.nn.AvgPool2d(3, stride=2, padding=1, count_include_pad=False), NHWC."""
    N, H, W, C = x.shape
    ph, pw = _pool_matrix_1d(H), _pool_matrix_1d(W)
    Ho, Wo = ph.shape[0], pw.shape[0]
    # TODO(synk): use a separable two-pass kernel instead of kron() at large resolutions.
    m = jnp.asarray(np.kron(ph, pw))                      # (Ho*Wo, H*W)
    x_flat = x.reshape(N, H * W, C)
    out = pl.pallas_call(
        _avgpool_mm_kernel,
        out_shape=jax.ShapeDtypeStruct((N, Ho * Wo, C), x.dtype),
        grid=(N,),
        in_specs=[
            pl.BlockSpec((None, H * W, C), lambda n: (n, 0, 0)),
            pl.BlockSpec((Ho * Wo, H * W), lambda n: (0, 0)),
        ],
        out_specs=pl.BlockSpec((None, Ho * Wo, C), lambda n: (n, 0, 0)),
        compiler_params=pltpu.CompilerParams(dimension_semantics=("parallel",)),
    )(x_flat, m)
    return out.reshape(N, Ho, Wo, C)


# --------------------------------------------------------------------------
# Module structure: NLayerDiscriminator / MultiscaleDiscriminator
# --------------------------------------------------------------------------
def _layer_specs(input_nc, ndf, n_layers):
    """(Cin, Cout, stride, use_bn, lrelu_slope) per conv, as in NLayerDiscriminator."""
    specs = [(input_nc, ndf, 2, False, 0.2)]
    nf = ndf
    for _ in range(1, n_layers):
        nf_prev, nf = nf, min(nf * 2, 512)
        specs.append((nf_prev, nf, 2, True, 0.2))
    nf_prev, nf = nf, min(nf * 2, 512)
    specs.append((nf_prev, nf, 1, True, 0.2))
    specs.append((nf, 1, 1, False, None))
    return specs


def make_nlayer_params(key, input_nc, ndf, n_layers):
    """Deterministic synthetic params; inference-mode BatchNorm folded into (w, b)."""
    params = []
    for cin, cout, stride, use_bn, slope in _layer_specs(input_nc, ndf, n_layers):
        key, kw, kb, kg, kbe, km, kv = jax.random.split(key, 7)
        w = jax.random.normal(kw, (4, 4, cin, cout), jnp.float32) / np.sqrt(16 * cin)
        b = 0.1 * jax.random.normal(kb, (cout,), jnp.float32)
        if use_bn:
            gamma = jax.random.uniform(kg, (cout,), jnp.float32, 0.5, 1.5)
            beta = 0.1 * jax.random.normal(kbe, (cout,), jnp.float32)
            mean = 0.1 * jax.random.normal(km, (cout,), jnp.float32)
            var = jax.random.uniform(kv, (cout,), jnp.float32, 0.5, 1.5)
            scale = gamma / jnp.sqrt(var + 1e-5)
            w = w * scale                      # fold BN scale into conv weights
            b = (b - mean) * scale + beta      # fold BN shift into conv bias
        params.append((w, b, stride, slope))
    return params


def nlayer_forward(x, layers):
    h = x
    for w, b, stride, slope in layers:
        h = conv4x4(h, w, b, stride=stride, neg_slope=slope)
    return h


def multiscale_forward(x_nhwc, all_params):
    """MultiscaleDiscriminator.forward (getIntermFeat=False): one map per scale."""
    num_d = len(all_params)
    results, inp = [], x_nhwc
    for i in range(num_d):
        results.append(nlayer_forward(inp, all_params[num_d - 1 - i]))
        if i != num_d - 1:
            inp = avgpool_3x3_s2(inp)
    return results


# --------------------------------------------------------------------------
# Pure-JAX reference (lax.conv / reduce_window) for validation
# --------------------------------------------------------------------------
def _conv_ref(x, w, b, stride):
    y = jax.lax.conv_general_dilated(
        x, w, (stride, stride), ((2, 2), (2, 2)),
        dimension_numbers=("NHWC", "HWIO", "NHWC"))
    return y + b


def _avgpool_ref(x):
    win, strd = (1, 3, 3, 1), (1, 2, 2, 1)
    pad = [(0, 0), (1, 1), (1, 1), (0, 0)]
    s = jax.lax.reduce_window(x, 0.0, jax.lax.add, win, strd, pad)
    cnt = jax.lax.reduce_window(jnp.ones_like(x), 0.0, jax.lax.add, win, strd, pad)
    return s / cnt


def multiscale_forward_ref(x_nhwc, all_params):
    num_d = len(all_params)
    results, inp = [], x_nhwc
    for i in range(num_d):
        h = inp
        for w, b, stride, slope in all_params[num_d - 1 - i]:
            h = _conv_ref(h, w, b, stride)
            if slope is not None:
                h = jnp.where(h >= 0.0, h, slope * h)
        results.append(h)
        if i != num_d - 1:
            inp = _avgpool_ref(inp)
    return results


# --------------------------------------------------------------------------
if __name__ == "__main__":
    # MultiscaleDiscriminator(input_nc=3, ndf=8, n_layers=3, num_D=3)
    input_nc, ndf, n_layers, num_d, ndf_max = 3, 8, 3, 3, 64

    key = jax.random.PRNGKey(0)
    kx, kp = jax.random.split(key)

    # PyTorch-convention input: NCHW
    x_nchw = jax.random.normal(kx, (2, input_nc, 32, 32), jnp.float32)

    all_params = []
    for i, kd in enumerate(jax.random.split(kp, num_d)):
        ndf_i = min(ndf_max, ndf * 2 ** (num_d - 1 - i))
        all_params.append(make_nlayer_params(kd, input_nc, ndf_i, n_layers))

    # layout glue: NCHW -> NHWC (channels on the lane axis inside the kernels)
    x_nhwc = jnp.transpose(x_nchw, (0, 2, 3, 1))

    outs = multiscale_forward(x_nhwc, all_params)
    outs = [jax.block_until_ready(o) for o in outs]

    refs = multiscale_forward_ref(x_nhwc, all_params)
    for o, r in zip(outs, refs):
        assert o.shape == r.shape, (o.shape, r.shape)
        err = float(jnp.max(jnp.abs(o - r)))
        assert jnp.allclose(o, r, atol=2e-3, rtol=2e-3), err

    # back to PyTorch's NCHW output convention (one 1-channel map per scale)
    outs_nchw = [jnp.transpose(o, (0, 3, 1, 2)) for o in outs]
    assert len(outs_nchw) == num_d and all(o.shape[1] == 1 for o in outs_nchw)

    print("KERNEL_OK")
</pallas_src>

<mosaic_0001>
module attributes {stable_mosaic.version = 11 : i64} {
  func.func @_conv_mm_kernel(%arg0: i32, %arg1: i32, %arg2: memref<1x342x12xf32, #tpu.memory_space<vmem>>, %arg3: memref<4x12x8xf32, #tpu.memory_space<vmem>>, %arg4: memref<1x8xf32, #tpu.memory_space<vmem>>, %arg5: memref<1x306x8xf32, #tpu.memory_space<vmem>>) attributes {dimension_semantics = [#tpu.dimension_semantics<parallel>, #tpu.dimension_semantics<parallel>], iteration_bounds = array<i64: 2, 1>, scalar_prefetch = 0 : i64, scratch_operands = 0 : i64, tpu.core_type = #tpu.core_type<tc>, window_params = [{transform_indices = @transform_0, window_bounds = array<i64: 1, 342, 12>}, {transform_indices = @transform_1, window_bounds = array<i64: 4, 12, 8>}, {transform_indices = @transform_2, window_bounds = array<i64: 1, 8>}, {transform_indices = @transform_3, window_bounds = array<i64: 1, 306, 8>}]} {
    %c0 = arith.constant 0 : index
    %c0_0 = arith.constant 0 : index
    %c0_1 = arith.constant 0 : index
    %0 = vector.load %arg2[%c0, %c0_0, %c0_1] : memref<1x342x12xf32, #tpu.memory_space<vmem>>, vector<1x306x12xf32>
    %1 = vector.shape_cast %0 : vector<1x306x12xf32> to vector<306x12xf32>
    %c0_2 = arith.constant 0 : index
    %c0_3 = arith.constant 0 : index
    %c0_4 = arith.constant 0 : index
    %2 = vector.load %arg3[%c0_2, %c0_3, %c0_4] : memref<4x12x8xf32, #tpu.memory_space<vmem>>, vector<1x12x8xf32>
    %3 = vector.shape_cast %2 : vector<1x12x8xf32> to vector<12x8xf32>
    %cst = arith.constant dense<0.000000e+00> : vector<306x8xf32>
    %4 = tpu.matmul %1, %3, %cst {dimension_numbers = #tpu.dot_dimension_numbers<[1], [0], [0], [1], [0, 0, 1, 1], [], []>} : vector<306x12xf32>, vector<12x8xf32>, vector<306x8xf32> -> vector<306x8xf32>
    %c0_5 = arith.constant 0 : index
    %c1 = arith.constant 1 : index
    %c0_6 = arith.constant 0 : index
    %5 = vector.load %arg2[%c0_5, %c1, %c0_6] : memref<1x342x12xf32, #tpu.memory_space<vmem>>, vector<1x306x12xf32>
    %6 = vector.shape_cast %5 : vector<1x306x12xf32> to vector<306x12xf32>
    %c1_7 = arith.constant 1 : index
    %c0_8 = arith.constant 0 : index
    %c0_9 = arith.constant 0 : index
    %7 = vector.load %arg3[%c1_7, %c0_8, %c0_9] : memref<4x12x8xf32, #tpu.memory_space<vmem>>, vector<1x12x8xf32>
    %8 = vector.shape_cast %7 : vector<1x12x8xf32> to vector<12x8xf32>
    %cst_10 = arith.constant dense<0.000000e+00> : vector<306x8xf32>
    %9 = tpu.matmul %6, %8, %cst_10 {dimension_numbers = #tpu.dot_dimension_numbers<[1], [0], [0], [1], [0, 0, 1, 1], [], []>} : vector<306x12xf32>, vector<12x8xf32>, vector<306x8xf32> -> vector<306x8xf32>
    %10 = arith.addf %4, %9 : vector<306x8xf32>
    %c0_11 = arith.constant 0 : index
    %c18 = arith.constant 18 : index
    %c0_12 = arith.constant 0 : index
    %11 = vector.load %arg2[%c0_11, %c18, %c0_12] : memref<1x342x12xf32, #tpu.memory_space<vmem>>, vector<1x306x12xf32>
    %12 = vector.shape_cast %11 : vector<1x306x12xf32> to vector<306x12xf32>
    %c2 = arith.constant 2 : index
    %c0_13 = arith.constant 0 : index
    %c0_14 = arith.constant 0 : index
    %13 = vector.load %arg3[%c2, %c0_13, %c0_14] : memref<4x12x8xf32, #tpu.memory_space<vmem>>, vector<1x12x8xf32>
    %14 = vector.shape_cast %13 : vector<1x12x8xf32> to vector<12x8xf32>
    %cst_15 = arith.constant dense<0.000000e+00> : vector<306x8xf32>
    %15 = tpu.matmul %12, %14, %cst_15 {dimension_numbers = #tpu.dot_dimension_numbers<[1], [0], [0], [1], [0, 0, 1, 1], [], []>} : vector<306x12xf32>, vector<12x8xf32>, vector<306x8xf32> -> vector<306x8xf32>
    %16 = arith.addf %10, %15 : vector<306x8xf32>
    %c0_16 = arith.constant 0 : index
    %c19 = arith.constant 19 : index
    %c0_17 = arith.constant 0 : index
    %17 = vector.load %arg2[%c0_16, %c19, %c0_17] : memref<1x342x12xf32, #tpu.memory_space<vmem>>, vector<1x306x12xf32>
    %18 = vector.shape_cast %17 : vector<1x306x12xf32> to vector<306x12xf32>
    %c3 = arith.constant 3 : index
    %c0_18 = arith.constant 0 : index
    %c0_19 = arith.constant 0 : index
    %19 = vector.load %arg3[%c3, %c0_18, %c0_19] : memref<4x12x8xf32, #tpu.memory_space<vmem>>, vector<1x12x8xf32>
    %20 = vector.shape_cast %19 : vector<1x12x8xf32> to vector<12x8xf32>
    %cst_20 = arith.constant dense<0.000000e+00> : vector<306x8xf32>
    %21 = tpu.matmul %18, %20, %cst_20 {dimension_numbers = #tpu.dot_dimension_numbers<[1], [0], [0], [1], [0, 0, 1, 1], [], []>} : vector<306x12xf32>, vector<12x8xf32>, vector<306x8xf32> -> vector<306x8xf32>
    %22 = arith.addf %16, %21 : vector<306x8xf32>
    %c0_21 = arith.constant 0 : index
    %c0_22 = arith.constant 0 : index
    %23 = vector.load %arg4[%c0_21, %c0_22] : memref<1x8xf32, #tpu.memory_space<vmem>>, vector<1x8xf32>
    %24 = vector.shape_cast %23 : vector<1x8xf32> to vector<8xf32>
    %25 = vector.shape_cast %24 : vector<8xf32> to vector<1x8xf32>
    %26 = vector.broadcast %25 : vector<1x8xf32> to vector<306x8xf32>
    %27 = arith.addf %22, %26 : vector<306x8xf32>
    %cst_23 = arith.constant 0.000000e+00 : f32
    %28 = vector.broadcast %cst_23 : f32 to vector<306x8xf32>
    %29 = arith.cmpf oge, %27, %28 : vector<306x8xf32>
    %cst_24 = arith.constant 2.000000e-01 : f32
    %30 = vector.broadcast %cst_24 : f32 to vector<306x8xf32>
    %31 = arith.mulf %30, %27 : vector<306x8xf32>
    %32 = arith.select %29, %27, %31 : vector<306x8xi1>, vector<306x8xf32>
    %c0_25 = arith.constant 0 : index
    %c0_26 = arith.constant 0 : index
    %c0_27 = arith.constant 0 : index
    %33 = vector.load %arg5[%c0_25, %c0_26, %c0_27] : memref<1x306x8xf32, #tpu.memory_space<vmem>>, vector<1x306x8xf32>
    %34 = vector.shape_cast %33 : vector<1x306x8xf32> to vector<306x8xf32>
    %35 = vector.shape_cast %32 : vector<306x8xf32> to vector<1x306x8xf32>
    tpu.vector_store %arg5[%c0_25, %c0_26, %c0_27], %35 {strides = array<i32>} : memref<1x306x8xf32, #tpu.memory_space<vmem>>, vector<1x306x8xf32>,
    return
  }
  func.func @transform_0(%arg0: i32, %arg1: i32) -> (i32, i32, i32) {
    %c0_i32 = arith.constant 0 : i32
    %c0_i32_0 = arith.constant 0 : i32
    %c0_i32_1 = arith.constant 0 : i32
    return %arg0, %c0_i32, %c0_i32_0 : i32, i32, i32
  }
  func.func @transform_1(%arg0: i32, %arg1: i32) -> (i32, i32, i32) {
    %c0_i32 = arith.constant 0 : i32
    %c0_i32_0 = arith.constant 0 : i32
    %c0_i32_1 = arith.constant 0 : i32
    return %c0_i32, %c0_i32_0, %arg1 : i32, i32, i32
  }
  func.func @transform_2(%arg0: i32, %arg1: i32) -> (i32, i32) {
    %c0_i32 = arith.constant 0 : i32
    %c0_i32_0 = arith.constant 0 : i32
    return %c0_i32, %arg1 : i32, i32
  }
  func.func @transform_3(%arg0: i32, %arg1: i32) -> (i32, i32, i32) {
    %c0_i32 = arith.constant 0 : i32
    %c0_i32_0 = arith.constant 0 : i32
    return %arg0, %c0_i32, %arg1 : i32, i32, i32
  }
}

</mosaic_0001>

<llo_original>
// kernel: tpu_custom_call.1
$region0: #{tpu_custom_call.1}
  #allocation0 [shape = 'u32[]', space=smem, size = 0x4, offset = 0x4, fixed_abs, tag = 'smem constant byte address 0x4 - core index']
  #allocation1 [shape = 'u32[144,128]{1,0:T(1,128)}', space=vmem, size = 0x12000, scoped, tag = 'internal scratch']
  %s0 = inlined_call_operand.vmem [shape: f32[2,342,12], index: 0, kind: input, shape index: {}]
  %s1 = inlined_call_operand.vmem [shape: f32[4,12,8], index: 1, kind: input, shape index: {}]
  %s2 = inlined_call_operand.vmem [shape: f32[1,8], index: 2, kind: input, shape index: {}]
  %s3 = inlined_call_operand.vmem [shape: f32[2,306,8], index: 3, kind: output, shape index: {}]
  %s4 = sld [smem:[#allocation0]]
  $region45: #{tpu_custom_call.1} parent=0
    _
  %s6 = ssub.s32 1, %s4
  %s7 = scalar_select 0, %s6, %s4
  loop: start=0, step=1, limit=4
  $region2: #{tpu_custom_call.1} parent=0 // loop_pre_header
    _
  $region3: #{tpu_custom_call.1} parent=0 // loop_header
    %s9 = sphi 0, %s13
    %p10 = scmp.ge.s32.totalorder %s9, 4
    %s16 = sphi 0, %s28
    %s17 = sphi 0, %s24
    %s18 = sphi 0, %s16
    %s19 = sphi 0, %s17
    %s20 = sphi 0, %s18
    %s21 = sphi 0, %s19
    %s31 = sphi 0, %s33
    %s34 = sphi 0, %s31
    %s35 = sphi 0, %s34
    %s51 = sphi 0, %s35
    %s57 = sphi 0, %s59
    %s60 = sphi 0, %s57
    %s61 = sphi 0, %s60
    %s77 = sphi 0, %s61
    %s83 = sphi 0, %s85
    %s86 = sphi 0, %s83
    %s87 = sphi 0, %s86
    %s103 = sphi 0, %s87
    %s111 = sphi 0, %s113
    %s114 = sphi 0, %s111
    %s115 = sphi 0, %s114
    %s131 = sphi 0, %s115
  $region4: #{tpu_custom_call.1} parent=0 // loop_header_branch
    %12 = sbr.rel (%p10) target = $region8
  $region5: #{tpu_custom_call.1} parent=0 // loop_body
    %s14 = ssub.s32 %s9, 1
    %s15 = ssub.s32 %s9, 2
    %s22 = sadd.s32 1, %s17
    %p23 = scmp.ge.s32.totalorder %s22, 1
    %s24 = scalar_select %p23, 0, %s22
    %s25 = sadd.s32 1, %s16
    %s26 = scalar_select %p23, %s25, %s16
    %p27 = scmp.ge.s32.totalorder %s26, 2
    %s28 = scalar_select %p27, 0, %s26
    %s29 = ssub.s32 %s16, %s28
    %p30 = scmp.eq.s32.totalorder %s29, 0
    %s32 = sadd.s32 %s31, 1
    %s33 = scalar_select %p30, %s31, %s32
    %p36 = pneg %p30
    %p37 = scmp.eq.s32.totalorder %s9, 1
    %p38 = por %p36, %p37
    %p39 = scmp.ne.s32.totalorder %s31, %s34
    %p40 = scmp.eq.s32.totalorder %s9, 0
    %p41 = por %p39, %p40
    %p42 = scmp.ne.s32.totalorder %s31, %s34
    %p43 = scmp.eq.s32.totalorder %s14, 1
    %p44 = por %p42, %p43
    %p45 = scmp.ne.s32.totalorder %s34, %s35
    %p46 = scmp.eq.s32.totalorder %s14, 0
    %p47 = por %p45, %p46
    %p48 = scmp.ne.s32.totalorder %s34, %s35
    %p49 = scmp.eq.s32.totalorder %s15, 1
    %p50 = por %p48, %p49
    %p52 = scmp.ne.s32.totalorder %s35, %s51
    %p53 = scmp.eq.s32.totalorder %s15, 0
    %p54 = por %p52, %p53
    %s55 = ssub.s32 %s17, %s24
    %p56 = scmp.eq.s32.totalorder %s55, 0
    %s58 = sadd.s32 %s57, 1
    %s59 = scalar_select %p56, %s57, %s58
    %p62 = pneg %p56
    %p63 = scmp.eq.s32.totalorder %s9, 1
    %p64 = por %p62, %p63
    %p65 = scmp.ne.s32.totalorder %s57, %s60
    %p66 = scmp.eq.s32.totalorder %s9, 0
    %p67 = por %p65, %p66
    %p68 = scmp.ne.s32.totalorder %s57, %s60
    %p69 = scmp.eq.s32.totalorder %s14, 1
    %p70 = por %p68, %p69
    %p71 = scmp.ne.s32.totalorder %s60, %s61
    %p72 = scmp.eq.s32.totalorder %s14, 0
    %p73 = por %p71, %p72
    %p74 = scmp.ne.s32.totalorder %s60, %s61
    %p75 = scmp.eq.s32.totalorder %s15, 1
    %p76 = por %p74, %p75
    %p78 = scmp.ne.s32.totalorder %s61, %s77
    %p79 = scmp.eq.s32.totalorder %s15, 0
    %p80 = por %p78, %p79
    %s81 = ssub.s32 %s17, %s24
    %p82 = scmp.eq.s32.totalorder %s81, 0
    %s84 = sadd.s32 %s83, 1
    %s85 = scalar_select %p82, %s83, %s84
    %p88 = pneg %p82
    %p89 = scmp.eq.s32.totalorder %s9, 1
    %p90 = por %p88, %p89
    %p91 = scmp.ne.s32.totalorder %s83, %s86
    %p92 = scmp.eq.s32.totalorder %s9, 0
    %p93 = por %p91, %p92
    %p94 = scmp.ne.s32.totalorder %s83, %s86
    %p95 = scmp.eq.s32.totalorder %s14, 1
    %p96 = por %p94, %p95
    %p97 = scmp.ne.s32.totalorder %s86, %s87
    %p98 = scmp.eq.s32.totalorder %s14, 0
    %p99 = por %p97, %p98
    %p100 = scmp.ne.s32.totalorder %s86, %s87
    %p101 = scmp.eq.s32.totalorder %s15, 1
    %p102 = por %p100, %p101
    %p104 = scmp.ne.s32.totalorder %s87, %s103
    %p105 = scmp.eq.s32.totalorder %s15, 0
    %p106 = por %p104, %p105
    %s107 = ssub.s32 %s16, %s28
    %s108 = ssub.s32 %s17, %s24
    %s109 = sor.u32 %s107, %s108
    %p110 = scmp.eq.s32.totalorder %s109, 0
    %s112 = sadd.s32 %s111, 1
    %s113 = scalar_select %p110, %s111, %s112
    %p116 = pneg %p110
    %p117 = scmp.eq.s32.totalorder %s9, 1
    %p118 = por %p116, %p117
    %p119 = scmp.ne.s32.totalorder %s111, %s114
    %p120 = scmp.eq.s32.totalorder %s9, 0
    %p121 = por %p119, %p120
    %p122 = scmp.ne.s32.totalorder %s111, %s114
    %p123 = scmp.eq.s32.totalorder %s14, 1
    %p124 = por %p122, %p123
    %p125 = scmp.ne.s32.totalorder %s114, %s115
    %p126 = scmp.eq.s32.totalorder %s14, 0
    %p127 = por %p125, %p126
    %p128 = scmp.ne.s32.totalorder %s114, %s115
    %p129 = scmp.eq.s32.totalorder %s15, 1
    %p130 = por %p128, %p129
    %p132 = scmp.ne.s32.totalorder %s115, %s131
    %p133 = scmp.eq.s32.totalorder %s15, 0
    %p134 = por %p132, %p133
    %p135 = scmp.le.s32.totalorder 1, %s9
    %p136 = scmp.lt.s32.totalorder %s9, 3
    %p137 = pnand %p135, %p136
    %p138 = pneg %p137
    // Predicated region
    $region9: #{tpu_custom_call.1} parent=5 // pred_check
      _
    $region10: #{tpu_custom_call.1} parent=5 // pred_check_branch
      %140 = sbr.rel (%p137) target = $region12
    $region11: #{tpu_custom_call.1} parent=5 // pred_region
      %s141 = ssub.s32 %s9, 1
      // Predicated region
      $region13: #{tpu_custom_call.1} parent=11 // pred_check
        %p142 = pneg %p73
      $region14: #{tpu_custom_call.1} parent=11 // pred_check_branch
        %144 = sbr.rel (%p142) target = $region16
      $region15: #{tpu_custom_call.1} parent=11 // pred_region
        %p145 = scmp.lt.s32.totalorder %s19, 0
        %s146 = scalar_select %p145, %s19, 0
        %s147 = smul.addr %s146, 8
        %s148 = scalar_lea.vmem %s1, %s147
      $region16: #{tpu_custom_call.1} parent=11 // pred_fallthru
        _
      // Predicated region
      $region17: #{tpu_custom_call.1} parent=11 // pred_check
        %p149 = pneg %p99
      $region18: #{tpu_custom_call.1} parent=11 // pred_check_branch
        %151 = sbr.rel (%p149) target = $region20
      $region19: #{tpu_custom_call.1} parent=11 // pred_region
        %p152 = scmp.lt.s32.totalorder %s19, 0
        %s153 = scalar_select %p152, %s19, 0
        %s154 = scalar_lea.vmem %s2, %s153
      $region20: #{tpu_custom_call.1} parent=11 // pred_fallthru
        _
    $region12: #{tpu_custom_call.1} parent=5 // pred_fallthru
      _
    %p155 = scmp.lt.s32.totalorder %s9, 2
    // Predicated region
    $region21: #{tpu_custom_call.1} parent=5 // pred_check
      %p156 = pneg %p155
    $region22: #{tpu_custom_call.1} parent=5 // pred_check_branch
      %158 = sbr.rel (%p156) target = $region24
    $region23: #{tpu_custom_call.1} parent=5 // pred_region
      // Predicated region
      $region25: #{tpu_custom_call.1} parent=23 // pred_check
        %p159 = pneg %p41
      $region26: #{tpu_custom_call.1} parent=23 // pred_check_branch
        %161 = sbr.rel (%p159) target = $region28
      $region27: #{tpu_custom_call.1} parent=23 // pred_region
        %p162 = scmp.lt.s32.totalorder %s16, 1
        %s163 = scalar_select %p162, %s16, 1
        %s164 = smul.addr %s163, 43
        %s165 = smul.addr %s164, 8
        %s166 = scalar_lea.vmem %s0, %s165
      $region28: #{tpu_custom_call.1} parent=23 // pred_fallthru
        _
    $region24: #{tpu_custom_call.1} parent=5 // pred_fallthru
      _
    %p167 = scmp.le.s32.totalorder 1, %s9
    %p168 = scmp.lt.s32.totalorder %s9, 3
    %p169 = pnand %p167, %p168
    %p170 = pneg %p169
    // Predicated region
    $region29: #{tpu_custom_call.1} parent=5 // pred_check
      _
    $region30: #{tpu_custom_call.1} parent=5 // pred_check_branch
      %172 = sbr.rel (%p169) target = $region32
    $region31: #{tpu_custom_call.1} parent=5 // pred_region
      %s173 = ssub.s32 %s9, 1
      %p174 = scmp.lt.s32.totalorder %s18, 1
      %s175 = scalar_select %p174, %s18, 1
      %s176 = smul.addr %s175, 43
      %s177 = smul.addr %s176, 8
      %s178 = scalar_lea.vmem %s0, %s177
      %p179 = pneg %p47
      %p180 = pneg %p44
      %p181 = scmp.lt.s32.totalorder %s19, 0
      %s182 = scalar_select %p181, %s19, 0
      %s183 = smul.addr %s182, 8
      %s184 = scalar_lea.vmem %s1, %s183
      %p185 = pneg %p73
      %p186 = pneg %p70
      %p187 = scmp.lt.s32.totalorder %s19, 0
      %s188 = scalar_select %p187, %s19, 0
      %s189 = scalar_lea.vmem %s2, %s188
      %p190 = pneg %p99
      %p191 = pneg %p96
      %p192 = pneg %p127
      %p193 = pneg %p124
      %p194 = scmp.lt.s32.totalorder %s18, 1
      %s195 = scalar_select %p194, %s18, 1
      %p196 = scmp.lt.s32.totalorder %s19, 0
      %s197 = scalar_select %p196, %s19, 0
      %s198 = smul.addr %s195, 39
      %s199 = sadd.s32 %s197, %s198
      %s200 = smul.addr %s199, 8
      %s201 = scalar_lea.vmem %s3, %s200
      %p202 = scmp.lt.s32.totalorder %s18, 1
      %s203 = scalar_select %p202, %s18, 1
      %s204 = smul.addr %s203, 43
      %s205 = smul.addr %s204, 8
      %s206 = scalar_lea.vmem %s0, %s205
      %p207 = scmp.lt.s32.totalorder %s19, 0
      %s208 = scalar_select %p207, %s19, 0
      %s209 = smul.addr %s208, 8
      %s210 = scalar_lea.vmem %s1, %s209
      %p211 = scmp.lt.s32.totalorder %s19, 0
      %s212 = scalar_select %p211, %s19, 0
      %s213 = scalar_lea.vmem %s2, %s212
      %p214 = scmp.lt.s32.totalorder %s18, 1
      %s215 = scalar_select %p214, %s18, 1
      %p216 = scmp.lt.s32.totalorder %s19, 0
      %s217 = scalar_select %p216, %s19, 0
      %s218 = smul.addr %s215, 39
      %s219 = sadd.s32 %s217, %s218
      %s220 = smul.addr %s219, 8
      %s221 = scalar_lea.vmem %s3, %s220
      %v222 = vld [vmem:[%s206] sm:$0xff]
      %v223 = vld [vmem:[%s206 + $0x8] sm:$0xff]
      %v224 = vld [vmem:[%s206 + $0x10] sm:$0xff]
      %v225 = vld [vmem:[%s206 + $0x18] sm:$0xff]
      %v226 = vld [vmem:[%s206 + $0x20] sm:$0xff]
      %v227 = vld [vmem:[%s206 + $0x28] sm:$0xff]
      %v228 = vld [vmem:[%s206 + $0x30] sm:$0xff]
      %v229 = vld [vmem:[%s206 + $0x38] sm:$0xff]
      %v230 = vld [vmem:[%s206 + $0x40] sm:$0xff]
      %v231 = vld [vmem:[%s206 + $0x48] sm:$0xff]
      %v232 = vld [vmem:[%s206 + $0x50] sm:$0xff]
      %v233 = vld [vmem:[%s206 + $0x58] sm:$0xff]
      %v234 = vld [vmem:[%s206 + $0x60] sm:$0xff]
      %v235 = vld [vmem:[%s206 + $0x68] sm:$0xff]
      %v236 = vld [vmem:[%s206 + $0x70] sm:$0xff]
      %v237 = vld [vmem:[%s206 + $0x78] sm:$0xff]
      %v238 = vld [vmem:[%s206 + $0x80] sm:$0xff]
      %v239 = vld [vmem:[%s206 + $0x88] sm:$0xff]
      %v240 = vld [vmem:[%s206 + $0x90] sm:$0xff]
      %v241 = vld [vmem:[%s206 + $0x98] sm:$0xff]
      %v242 = vld [vmem:[%s206 + $0xa0] sm:$0xff]
      %v243 = vld [vmem:[%s206 + $0xa8] sm:$0xff]
      %v244 = vld [vmem:[%s206 + $0xb0] sm:$0xff]
      %v245 = vld [vmem:[%s206 + $0xb8] sm:$0xff]
      %v246 = vld [vmem:[%s206 + $0xc0] sm:$0xff]
      %v247 = vld [vmem:[%s206 + $0xc8] sm:$0xff]
      %v248 = vld [vmem:[%s206 + $0xd0] sm:$0xff]
      %v249 = vld [vmem:[%s206 + $0xd8] sm:$0xff]
      %v250 = vld [vmem:[%s206 + $0xe0] sm:$0xff]
      %v251 = vld [vmem:[%s206 + $0xe8] sm:$0xff]
      %v252 = vld [vmem:[%s206 + $0xf0] sm:$0xff]
      %v253 = vld [vmem:[%s206 + $0xf8] sm:$0xff]
      %v254 = vld [vmem:[%s206 + $0x100] sm:$0xff]
      %v255 = vld [vmem:[%s206 + $0x108] sm:$0xff]
      %v256 = vld [vmem:[%s206 + $0x110] sm:$0xff]
      %v257 = vld [vmem:[%s206 + $0x118] sm:$0xff]
      %v258 = vld [vmem:[%s206 + $0x120] sm:$0xff]
      %v259 = vld [vmem:[%s206 + $0x128] sm:$0xff]
      %v260 = vld [vmem:[%s206 + $0x130] sm:$0x3]
      %v261 = vld [vmem:[%s210] sm:$0xff]
      %v262 = vld [vmem:[%s210 + $0x8] sm:$0xf]
      %v263 = vld [vmem:[%s206 + $0x1] sm:$0xff]
      %v264 = vld [vmem:[%s206 + $0x9] sm:$0xff]
      %v265 = vld [vmem:[%s206 + $0x11] sm:$0xff]
      %v266 = vld [vmem:[%s206 + $0x19] sm:$0xff]
      %v267 = vld [vmem:[%s206 + $0x21] sm:$0xff]
      %v268 = vld [vmem:[%s206 + $0x29] sm:$0xff]
      %v269 = vld [vmem:[%s206 + $0x31] sm:$0xff]
      %v270 = vld [vmem:[%s206 + $0x39] sm:$0xff]
      %v271 = vld [vmem:[%s206 + $0x41] sm:$0xff]
      %v272 = vld [vmem:[%s206 + $0x49] sm:$0xff]
      %v273 = vld [vmem:[%s206 + $0x51] sm:$0xff]
      %v274 = vld [vmem:[%s206 + $0x59] sm:$0xff]
      %v275 = vld [vmem:[%s206 + $0x61] sm:$0xff]
      %v276 = vld [vmem:[%s206 + $0x69] sm:$0xff]
      %v277 = vld [vmem:[%s206 + $0x71] sm:$0xff]
      %v278 = vld [vmem:[%s206 + $0x79] sm:$0xff]
      %v279 = vld [vmem:[%s206 + $0x81] sm:$0xff]
      %v280 = vld [vmem:[%s206 + $0x89] sm:$0xff]
      %v281 = vld [vmem:[%s206 + $0x91] sm:$0xff]
      %v282 = vld [vmem:[%s206 + $0x99] sm:$0xff]
      %v283 = vld [vmem:[%s206 + $0xa1] sm:$0xff]
      %v284 = vld [vmem:[%s206 + $0xa9] sm:$0xff]
      %v285 = vld [vmem:[%s206 + $0xb1] sm:$0xff]
      %v286 = vld [vmem:[%s206 + $0xb9] sm:$0xff]
      %v287 = vld [vmem:[%s206 + $0xc1] sm:$0xff]
      %v288 = vld [vmem:[%s206 + $0xc9] sm:$0xff]
      %v289 = vld [vmem:[%s206 + $0xd1] sm:$0xff]
      %v290 = vld [vmem:[%s206 + $0xd9] sm:$0xff]
      %v291 = vld [vmem:[%s206 + $0xe1] sm:$0xff]
      %v292 = vld [vmem:[%s206 + $0xe9] sm:$0xff]
      %v293 = vld [vmem:[%s206 + $0xf1] sm:$0xff]
      %v294 = vld [vmem:[%s206 + $0xf9] sm:$0xff]
      %v295 = vld [vmem:[%s206 + $0x101] sm:$0xff]
      %v296 = vld [vmem:[%s206 + $0x109] sm:$0xff]
      %v297 = vld [vmem:[%s206 + $0x111] sm:$0xff]
      %v298 = vld [vmem:[%s206 + $0x119] sm:$0xff]
      %v299 = vld [vmem:[%s206 + $0x121] sm:$0xff]
      %v300 = vld [vmem:[%s206 + $0x129] sm:$0xff]
      %v301 = vld [vmem:[%s206 + $0x131] sm:$0x3]
      %s302 = scalar_lea.vmem %s210, 16
      %v303 = vld [vmem:[%s302] sm:$0xff]
      %v304 = vld [vmem:[%s302 + $0x8] sm:$0xf]
      %vm305 = vcmask 97280
      %v307 = vsel %vm305, %v263, 0
      %v310 = vsel %vm305, %v264, 0
      %v313 = vsel %vm305, %v265, 0
      %v316 = vsel %vm305, %v266, 0
      %v319 = vsel %vm305, %v267, 0
      %v322 = vsel %vm305, %v268, 0
      %v325 = vsel %vm305, %v269, 0
      %v328 = vsel %vm305, %v270, 0
      %v331 = vsel %vm305, %v271, 0
      %v334 = vsel %vm305, %v272, 0
      %v337 = vsel %vm305, %v273, 0
      %v340 = vsel %vm305, %v274, 0
      %v343 = vsel %vm305, %v275, 0
      %v346 = vsel %vm305, %v276, 0
      %v349 = vsel %vm305, %v277, 0
      %v352 = vsel %vm305, %v278, 0
      %v355 = vsel %vm305, %v279, 0
      %v358 = vsel %vm305, %v280, 0
      %v361 = vsel %vm305, %v281, 0
      %v364 = vsel %vm305, %v282, 0
      %v367 = vsel %vm305, %v283, 0
      %v370 = vsel %vm305, %v284, 0
      %v373 = vsel %vm305, %v285, 0
      %v376 = vsel %vm305, %v286, 0
      %v379 = vsel %vm305, %v287, 0
      %v382 = vsel %vm305, %v288, 0
      %v385 = vsel %vm305, %v289, 0
      %v388 = vsel %vm305, %v290, 0
      %v391 = vsel %vm305, %v291, 0
      %v394 = vsel %vm305, %v292, 0
      %v397 = vsel %vm305, %v293, 0
      %v400 = vsel %vm305, %v294, 0
      %v403 = vsel %vm305, %v295, 0
      %v406 = vsel %vm305, %v296, 0
      %v409 = vsel %vm305, %v297, 0
      %v412 = vsel %vm305, %v298, 0
      %v415 = vsel %vm305, %v299, 0
      %v418 = vsel %vm305, %v300, 0
      %v421 = vsel %vm305, %v301, 0
      %vm423 = vcmask 1043456
      %v425 = vsel %vm423, %v304, 0
      %427 = vmatprep.subr.mxu0 0.0
      %428 = vmatpush1.msra.mxu0 %v303
      %429 = vmatprep.subr.mxu0 0.0
      %430 = vmatpush1.msra.mxu0 %v425
      %431 = vmatprep.subr.mxu0 0.0
      %432 = vmatpush1.msra.mxu0 0.0
      %433 = vmatprep.subr.mxu0 0.0
      %434 = vmatpush1.msra.mxu0 0.0
      %435 = vmatprep.subr.mxu0 0.0
      %436 = vmatpush1.msra.mxu0 0.0
      %437 = vmatprep.subr.mxu0 0.0
      %438 = vmatpush1.msra.mxu0 0.0
      %439 = vmatprep.subr.mxu0 0.0
      %440 = vmatpush1.msra.mxu0 0.0
      %441 = vmatprep.subr.mxu0 0.0
      %442 = vmatpush1.msra.mxu0 0.0
      %443 = vmatprep.subr.mxu0 0.0
      %444 = vmatpush1.msra.mxu0 0.0
      %445 = vmatprep.subr.mxu0 0.0
      %446 = vmatpush1.msra.mxu0 0.0
      %447 = vmatprep.subr.mxu0 0.0
      %448 = vmatpush1.msra.mxu0 0.0
      %449 = vmatprep.subr.mxu0 0.0
      %450 = vmatpush1.msra.mxu0 0.0
      %451 = vmatprep.subr.mxu0 0.0
      %452 = vmatpush1.msra.mxu0 0.0
      %453 = vmatprep.subr.mxu0 0.0
      %454 = vmatpush1.msra.mxu0 0.0
      %455 = vmatprep.subr.mxu0 0.0
      %456 = vmatpush1.msra.mxu0 0.0
      %457 = vmatprep.subr.mxu0 0.0
      %458 = vmatpush1.msra.mxu0 0.0
      %459 = vmatprep.subr.mxu0 0.0
      %460 = vmatpush1.msra.mxu0 0.0
      %461 = vmatprep.subr.mxu0 0.0
      %462 = vmatpush1.msra.mxu0 0.0
      %463 = vmatprep.subr.mxu0 0.0
      %464 = vmatpush1.msra.mxu0 0.0
      %465 = vmatprep.subr.mxu0 0.0
      %466 = vmatpush1.msra.mxu0 0.0
      %467 = vmatprep.subr.mxu0 0.0
      %468 = vmatpush1.msra.mxu0 0.0
      %469 = vmatprep.subr.mxu0 0.0
      %470 = vmatpush1.msra.mxu0 0.0
      %471 = vmatprep.subr.mxu0 0.0
      %472 = vmatpush1.msra.mxu0 0.0
      %473 = vmatprep.subr.mxu0 0.0
      %474 = vmatpush1.msra.mxu0 0.0
      %475 = vmatprep.subr.mxu0 0.0
      %476 = vmatpush1.msra.mxu0 0.0
      %477 = vmatprep.subr.mxu0 0.0
      %478 = vmatpush1.msra.mxu0 0.0
      %479 = vmatprep.subr.mxu0 0.0
      %480 = vmatpush1.msra.mxu0 0.0
      %481 = vmatprep.subr.mxu0 0.0
      %482 = vmatpush1.msra.mxu0 0.0
      %483 = vmatprep.subr.mxu0 0.0
      %484 = vmatpush1.msra.mxu0 0.0
      %485 = vmatprep.subr.mxu0 0.0
      %486 = vmatpush1.msra.mxu0 0.0
      %487 = vmatprep.subr.mxu0 0.0
      %488 = vmatpush1.msra.mxu0 0.0
      %489 = vmatprep.subr.mxu0 0.0
      %490 = vmatpush1.msra.mxu0 0.0
      %491 = vmatprep.mubr.f32.mxu0 0.0
      %492 = vmatmul.mubr.f32.gmra.mrb[0].mxu0 %v307
      %v493 = vpop.f32.mrb[0].mxu0
      %v494 = vadd.f32 0.0, %v493
      %v495 = vpop.f32.mrb[0].mxu0
      %496 = vmatprep.mubr.f32.mxu0 0.0
      %497 = vmatmul.mubr.f32.gmra.mrb[0].mxu0 %v310
      %v498 = vpop.f32.mrb[0].mxu0
      %v499 = vadd.f32 0.0, %v498
      %v500 = vpop.f32.mrb[0].mxu0
      %501 = vmatprep.mubr.f32.mxu0 0.0
      %502 = vmatmul.mubr.f32.gmra.mrb[0].mxu0 %v313
      %v503 = vpop.f32.mrb[0].mxu0
      %v504 = vadd.f32 0.0, %v503
      %v505 = vpop.f32.mrb[0].mxu0
      %506 = vmatprep.mubr.f32.mxu0 0.0
      %507 = vmatmul.mubr.f32.gmra.mrb[0].mxu0 %v316
      %v508 = vpop.f32.mrb[0].mxu0
      %v509 = vadd.f32 0.0, %v508
      %v510 = vpop.f32.mrb[0].mxu0
      %511 = vmatprep.mubr.f32.mxu0 0.0
      %512 = vmatmul.mubr.f32.gmra.mrb[0].mxu0 %v319
      %v513 = vpop.f32.mrb[0].mxu0
      %v514 = vadd.f32 0.0, %v513
      %v515 = vpop.f32.mrb[0].mxu0
      %516 = vmatprep.mubr.f32.mxu0 0.0
      %517 = vmatmul.mubr.f32.gmra.mrb[0].mxu0 %v322
      %v518 = vpop.f32.mrb[0].mxu0
      %v519 = vadd.f32 0.0, %v518
      %v520 = vpop.f32.mrb[0].mxu0
      %521 = vmatprep.mubr.f32.mxu0 0.0
      %522 = vmatmul.mubr.f32.gmra.mrb[0].mxu0 %v325
      %v523 = vpop.f32.mrb[0].mxu0
      %v524 = vadd.f32 0.0, %v523
      %v525 = vpop.f32.mrb[0].mxu0
      %526 = vmatprep.mubr.f32.mxu0 0.0
      %527 = vmatmul.mubr.f32.gmra.mrb[0].mxu0 %v328
      %v528 = vpop.f32.mrb[0].mxu0
      %v529 = vadd.f32 0.0, %v528
      %v530 = vpop.f32.mrb[0].mxu0
      %531 = vmatprep.mubr.f32.mxu0 0.0
      %532 = vmatmul.mubr.f32.gmra.mrb[0].mxu0 %v331
      %v533 = vpop.f32.mrb[0].mxu0
      %v534 = vadd.f32 0.0, %v533
      %v535 = vpop.f32.mrb[0].mxu0
      %536 = vmatprep.mubr.f32.mxu0 0.0
      %537 = vmatmul.mubr.f32.gmra.mrb[0].mxu0 %v334
      %v538 = vpop.f32.mrb[0].mxu0
      %v539 = vadd.f32 0.0, %v538
      %v540 = vpop.f32.mrb[0].mxu0
      %541 = vmatprep.mubr.f32.mxu0 0.0
      %542 = vmatmul.mubr.f32.gmra.mrb[0].mxu0 %v337
      %v543 = vpop.f32.mrb[0].mxu0
      %v544 = vadd.f32 0.0, %v543
      %v545 = vpop.f32.mrb[0].mxu0
      %546 = vmatprep.mubr.f32.mxu0 0.0
      %547 = vmatmul.mubr.f32.gmra.mrb[0].mxu0 %v340
      %v548 = vpop.f32.mrb[0].mxu0
      %v549 = vadd.f32 0.0, %v548
      %v550 = vpop.f32.mrb[0].mxu0
      %551 = vmatprep.mubr.f32.mxu0 0.0
      %552 = vmatmul.mubr.f32.gmra.mrb[0].mxu0 %v343
      %v553 = vpop.f32.mrb[0].mxu0
      %v554 = vadd.f32 0.0, %v553
      %v555 = vpop.f32.mrb[0].mxu0
      %556 = vmatprep.mubr.f32.mxu0 0.0
      %557 = vmatmul.mubr.f32.gmra.mrb[0].mxu0 %v346
      %v558 = vpop.f32.mrb[0].mxu0
      %v559 = vadd.f32 0.0, %v558
      %v560 = vpop.f32.mrb[0].mxu0
      %561 = vmatprep.mubr.f32.mxu0 0.0
      %562 = vmatmul.mubr.f32.gmra.mrb[0].mxu0 %v349
      %v563 = vpop.f32.mrb[0].mxu0
      %v564 = vadd.f32 0.0, %v563
      %v565 = vpop.f32.mrb[0].mxu0
      %566 = vmatprep.mubr.f32.mxu0 0.0
      %567 = vmatmul.mubr.f32.gmra.mrb[0].mxu0 %v352
      %v568 = vpop.f32.mrb[0].mxu0
      %v569 = vadd.f32 0.0, %v568
      %v570 = vpop.f32.mrb[0].mxu0
      %571 = vmatprep.mubr.f32.mxu0 0.0
      %572 = vmatmul.mubr.f32.gmra.mrb[0].mxu0 %v355
      %v573 = vpop.f32.mrb[0].mxu0
      %v574 = vadd.f32 0.0, %v573
      %v575 = vpop.f32.mrb[0].mxu0
      %576 = vmatprep.mubr.f32.mxu0 0.0
      %577 = vmatmul.mubr.f32.gmra.mrb[0].mxu0 %v358
      %v578 = vpop.f32.mrb[0].mxu0
      %v579 = vadd.f32 0.0, %v578
      %v580 = vpop.f32.mrb[0].mxu0
      %581 = vmatprep.mubr.f32.mxu0 0.0
      %582 = vmatmul.mubr.f32.gmra.mrb[0].mxu0 %v361
      %v583 = vpop.f32.mrb[0].mxu0
      %v584 = vadd.f32 0.0, %v583
      %v585 = vpop.f32.mrb[0].mxu0
      %586 = vmatprep.mubr.f32.mxu0 0.0
      %587 = vmatmul.mubr.f32.gmra.mrb[0].mxu0 %v364
      %v588 = vpop.f32.mrb[0].mxu0
      %v589 = vadd.f32 0.0, %v588
      %v590 = vpop.f32.mrb[0].mxu0
      %591 = vmatprep.mubr.f32.mxu0 0.0
      %592 = vmatmul.mubr.f32.gmra.mrb[0].mxu0 %v367
      %v593 = vpop.f32.mrb[0].mxu0
      %v594 = vadd.f32 0.0, %v593
      %v595 = vpop.f32.mrb[0].mxu0
      %596 = vmatprep.mubr.f32.mxu0 0.0
      %597 = vmatmul.mubr.f32.gmra.mrb[0].mxu0 %v370
      %v598 = vpop.f32.mrb[0].mxu0
      %v599 = vadd.f32 0.0, %v598
      %v600 = vpop.f32.mrb[0].mxu0
      %601 = vmatprep.mubr.f32.mxu0 0.0
      %602 = vmatmul.mubr.f32.gmra.mrb[0].mxu0 %v373
      %v603 = vpop.f32.mrb[0].mxu0
      %v604 = vadd.f32 0.0, %v603
      %v605 = vpop.f32.mrb[0].mxu0
      %606 = vmatprep.mubr.f32.mxu0 0.0
      %607 = vmatmul.mubr.f32.gmra.mrb[0].mxu0 %v376
      %v608 = vpop.f32.mrb[0].mxu0
      %v609 = vadd.f32 0.0, %v608
      %v610 = vpop.f32.mrb[0].mxu0
      %611 = vmatprep.mubr.f32.mxu0 0.0
      %612 = vmatmul.mubr.f32.gmra.mrb[0].mxu0 %v379
      %v613 = vpop.f32.mrb[0].mxu0
      %v614 = vadd.f32 0.0, %v613
      %v615 = vpop.f32.mrb[0].mxu0
      %616 = vmatprep.mubr.f32.mxu0 0.0
      %617 = vmatmul.mubr.f32.gmra.mrb[0].mxu0 %v382
      %v618 = vpop.f32.mrb[0].mxu0
      %v619 = vadd.f32 0.0, %v618
      %v620 = vpop.f32.mrb[0].mxu0
      %621 = vmatprep.mubr.f32.mxu0 0.0
      %622 = vmatmul.mubr.f32.gmra.mrb[0].mxu0 %v385
      %v623 = vpop.f32.mrb[0].mxu0
      %v624 = vadd.f32 0.0, %v623
      %v625 = vpop.f32.mrb[0].mxu0
      %626 = vmatprep.mubr.f32.mxu0 0.0
      %627 = vmatmul.mubr.f32.gmra.mrb[0].mxu0 %v388
      %v628 = vpop.f32.mrb[0].mxu0
      %v629 = vadd.f32 0.0, %v628
      %v630 = vpop.f32.mrb[0].mxu0
      %631 = vmatprep.mubr.f32.mxu0 0.0
      %632 = vmatmul.mubr.f32.gmra.mrb[0].mxu0 %v391
      %v633 = vpop.f32.mrb[0].mxu0
      %v634 = vadd.f32 0.0, %v633
      %v635 = vpop.f32.mrb[0].mxu0
      %636 = vmatprep.mubr.f32.mxu0 0.0
      %637 = vmatmul.mubr.f32.gmra.mrb[0].mxu0 %v394
      %v638 = vpop.f32.mrb[0].mxu0
      %v639 = vadd.f32 0.0, %v638
      %v640 = vpop.f32.mrb[0].mxu0
      %641 = vmatprep.mubr.f32.mxu0 0.0
      %642 = vmatmul.mubr.f32.gmra.mrb[0].mxu0 %v397
      %v643 = vpop.f32.mrb[0].mxu0
      %v644 = vadd.f32 0.0, %v643
      %v645 = vpop.f32.mrb[0].mxu0
      %646 = vmatprep.mubr.f32.mxu0 0.0
      %647 = vmatmul.mubr.f32.gmra.mrb[0].mxu0 %v400
      %v648 = vpop.f32.mrb[0].mxu0
      %v649 = vadd.f32 0.0, %v648
      %v650 = vpop.f32.mrb[0].mxu0
      %651 = vmatprep.mubr.f32.mxu0 0.0
      %652 = vmatmul.mubr.f32.gmra.mrb[0].mxu0 %v403
      %v653 = vpop.f32.mrb[0].mxu0
      %v654 = vadd.f32 0.0, %v653
      %v655 = vpop.f32.mrb[0].mxu0
      %656 = vmatprep.mubr.f32.mxu0 0.0
      %657 = vmatmul.mubr.f32.gmra.mrb[0].mxu0 %v406
      %v658 = vpop.f32.mrb[0].mxu0
      %v659 = vadd.f32 0.0, %v658
      %v660 = vpop.f32.mrb[0].mxu0
      %661 = vmatprep.mubr.f32.mxu0 0.0
      %662 = vmatmul.mubr.f32.gmra.mrb[0].mxu0 %v409
      %v663 = vpop.f32.mrb[0].mxu0
      %v664 = vadd.f32 0.0, %v663
      %v665 = vpop.f32.mrb[0].mxu0
      %666 = vmatprep.mubr.f32.mxu0 0.0
      %667 = vmatmul.mubr.f32.gmra.mrb[0].mxu0 %v412
      %v668 = vpop.f32.mrb[0].mxu0
      %v669 = vadd.f32 0.0, %v668
      %v670 = vpop.f32.mrb[0].mxu0
      %671 = vmatprep.mubr.f32.mxu0 0.0
      %672 = vmatmul.mubr.f32.gmra.mrb[0].mxu0 %v415
      %v673 = vpop.f32.mrb[0].mxu0
      %v674 = vadd.f32 0.0, %v673
      %v675 = vpop.f32.mrb[0].mxu0
      %676 = vmatprep.mubr.f32.mxu0 0.0
      %677 = vmatmul.mubr.f32.gmra.mrb[0].mxu0 %v418
      %v678 = vpop.f32.mrb[0].mxu0
      %v679 = vadd.f32 0.0, %v678
      %v680 = vpop.f32.mrb[0].mxu0
      %681 = vmatprep.mubr.f32.mxu0 0.0
      %682 = vmatmul.mubr.f32.gmra.mrb[0].mxu0 %v421
      %v683 = vpop.f32.mrb[0].mxu0
      %v684 = vadd.f32 0.0, %v683
      %v685 = vpop.f32.mrb[0].mxu0
      %686 = vdwg.mxu0
      %v688 = vsel %vm305, %v222, 0
      %v691 = vsel %vm305, %v223, 0
      %v694 = vsel %vm305, %v224, 0
      %v697 = vsel %vm305, %v225, 0
      %v700 = vsel %vm305, %v226, 0
      %v703 = vsel %vm305, %v227, 0
      %v706 = vsel %vm305, %v228, 0
      %v709 = vsel %vm305, %v229, 0
      %v712 = vsel %vm305, %v230, 0
      %v715 = vsel %vm305, %v231, 0
      %v718 = vsel %vm305, %v232, 0
      %v721 = vsel %vm305, %v233, 0
      %v724 = vsel %vm305, %v234, 0
      %v727 = vsel %vm305, %v235, 0
      %v730 = vsel %vm305, %v236, 0
      %v733 = vsel %vm305, %v237, 0
      %v736 = vsel %vm305, %v238, 0
      %v739 = vsel %vm305, %v239, 0
      %v742 = vsel %vm305, %v240, 0
      %v745 = vsel %vm305, %v241, 0
      %v748 = vsel %vm305, %v242, 0
      %v751 = vsel %vm305, %v243, 0
      %v754 = vsel %vm305, %v244, 0
      %v757 = vsel %vm305, %v245, 0
      %v760 = vsel %vm305, %v246, 0
      %v763 = vsel %vm305, %v247, 0
      %v766 = vsel %vm305, %v248, 0
      %v769 = vsel %vm305, %v249, 0
      %v772 = vsel %vm305, %v250, 0
      %v775 = vsel %vm305, %v251, 0
      %v778 = vsel %vm305, %v252, 0
      %v781 = vsel %vm305, %v253, 0
      %v784 = vsel %vm305, %v254, 0
      %v787 = vsel %vm305, %v255, 0
      %v790 = vsel %vm305, %v256, 0
      %v793 = vsel %vm305, %v257, 0
      %v796 = vsel %vm305, %v258, 0
      %v799 = vsel %vm305, %v259, 0
      %v802 = vsel %vm305, %v260, 0
      %v805 = vsel %vm423, %v262, 0
      %807 = vmatprep.subr.mxu0 0.0
      %808 = vmatpush1.msra.mxu0 %v261
      %809 = vmatprep.subr.mxu0 0.0
      %810 = vmatpush1.msra.mxu0 %v805
      %811 = vmatprep.subr.mxu0 0.0
      %812 = vmatpush1.msra.mxu0 0.0
      %813 = vmatprep.subr.mxu0 0.0
      %814 = vmatpush1.msra.mxu0 0.0
      %815 = vmatprep.subr.mxu0 0.0
      %816 = vmatpush1.msra.mxu0 0.0
      %817 = vmatprep.subr.mxu0 0.0
      %818 = vmatpush1.msra.mxu0 0.0
      %819 = vmatprep.subr.mxu0 0.0
      %820 = vmatpush1.msra.mxu0 0.0
      %821 = vmatprep.subr.mxu0 0.0
      %822 = vmatpush1.msra.mxu0 0.0
      %823 = vmatprep.subr.mxu0 0.0
      %824 = vmatpush1.msra.mxu0 0.0
      %825 = vmatprep.subr.mxu0 0.0
      %826 = vmatpush1.msra.mxu0 0.0
      %827 = vmatprep.subr.mxu0 0.0
      %828 = vmatpush1.msra.mxu0 0.0
      %829 = vmatprep.subr.mxu0 0.0
      %830 = vmatpush1.msra.mxu0 0.0
      %831 = vmatprep.subr.mxu0 0.0
      %832 = vmatpush1.msra.mxu0 0.0
      %833 = vmatprep.subr.mxu0 0.0
      %834 = vmatpush1.msra.mxu0 0.0
      %835 = vmatprep.subr.mxu0 0.0
      %836 = vmatpush1.msra.mxu0 0.0
      %837 = vmatprep.subr.mxu0 0.0
      %838 = vmatpush1.msra.mxu0 0.0
      %839 = vmatprep.subr.mxu0 0.0
      %840 = vmatpush1.msra.mxu0 0.0
      %841 = vmatprep.subr.mxu0 0.0
      %842 = vmatpush1.msra.mxu0 0.0
      %843 = vmatprep.subr.mxu0 0.0
      %844 = vmatpush1.msra.mxu0 0.0
      %845 = vmatprep.subr.mxu0 0.0
      %846 = vmatpush1.msra.mxu0 0.0
      %847 = vmatprep.subr.mxu0 0.0
      %848 = vmatpush1.msra.mxu0 0.0
      %849 = vmatprep.subr.mxu0 0.0
      %850 = vmatpush1.msra.mxu0 0.0
      %851 = vmatprep.subr.mxu0 0.0
      %852 = vmatpush1.msra.mxu0 0.0
      %853 = vmatprep.subr.mxu0 0.0
      %854 = vmatpush1.msra.mxu0 0.0
      %855 = vmatprep.subr.mxu0 0.0
      %856 = vmatpush1.msra.mxu0 0.0
      %857 = vmatprep.subr.mxu0 0.0
      %858 = vmatpush1.msra.mxu0 0.0
      %859 = vmatprep.subr.mxu0 0.0
      %860 = vmatpush1.msra.mxu0 0.0
      %861 = vmatprep.subr.mxu0 0.0
      %862 = vmatpush1.msra.mxu0 0.0
      %863 = vmatprep.subr.mxu0 0.0
      %864 = vmatpush1.msra.mxu0 0.0
      %865 = vmatprep.subr.mxu0 0.0
      %866 = vmatpush1.msra.mxu0 0.0
      %867 = vmatprep.subr.mxu0 0.0
      %868 = vmatpush1.msra.mxu0 0.0
      %869 = vmatprep.subr.mxu0 0.0
      %870 = vmatpush1.msra.mxu0 0.0
      %871 = vmatprep.mubr.f32.mxu0 0.0
      %872 = vmatmul.mubr.f32.gmra.mrb[0].mxu0 %v688
      %v873 = vpop.f32.mrb[0].mxu0
      %v874 = vadd.f32 %v494, %v873
      %v875 = vpop.f32.mrb[0].mxu0
      %876 = vmatprep.mubr.f32.mxu0 0.0
      %877 = vmatmul.mubr.f32.gmra.mrb[0].mxu0 %v691
      %v878 = vpop.f32.mrb[0].mxu0
      %v879 = vadd.f32 %v499, %v878
      %v880 = vpop.f32.mrb[0].mxu0
      %881 = vmatprep.mubr.f32.mxu0 0.0
      %882 = vmatmul.mubr.f32.gmra.mrb[0].mxu0 %v694
      %v883 = vpop.f32.mrb[0].mxu0
      %v884 = vadd.f32 %v504, %v883
      %v885 = vpop.f32.mrb[0].mxu0
      %886 = vmatprep.mubr.f32.mxu0 0.0
      %887 = vmatmul.mubr.f32.gmra.mrb[0].mxu0 %v697
      %v888 = vpop.f32.mrb[0].mxu0
      %v889 = vadd.f32 %v509, %v888
      %v890 = vpop.f32.mrb[0].mxu0
      %891 = vmatprep.mubr.f32.mxu0 0.0
      %892 = vmatmul.mubr.f32.gmra.mrb[0].mxu0 %v700
      %v893 = vpop.f32.mrb[0].mxu0
      %v894 = vadd.f32 %v514, %v893
      %v895 = vpop.f32.mrb[0].mxu0
      %896 = vmatprep.mubr.f32.mxu0 0.0
      %897 = vmatmul.mubr.f32.gmra.mrb[0].mxu0 %v703
      %v898 = vpop.f32.mrb[0].mxu0
      %v899 = vadd.f32 %v519, %v898
      %v900 = vpop.f32.mrb[0].mxu0
      %901 = vmatprep.mubr.f32.mxu0 0.0
      %902 = vmatmul.mubr.f32.gmra.mrb[0].mxu0 %v706
      %v903 = vpop.f32.mrb[0].mxu0
      %v904 = vadd.f32 %v524, %v903
      %v905 = vpop.f32.mrb[0].mxu0
      %906 = vmatprep.mubr.f32.mxu0 0.0
      %907 = vmatmul.mubr.f32.gmra.mrb[0].mxu0 %v709
      %v908 = vpop.f32.mrb[0].mxu0
      %v909 = vadd.f32 %v529, %v908
      %v910 = vpop.f32.mrb[0].mxu0
      %911 = vmatprep.mubr.f32.mxu0 0.0
      %912 = vmatmul.mubr.f32.gmra.mrb[0].mxu0 %v712
      %v913 = vpop.f32.mrb[0].mxu0
      %v914 = vadd.f32 %v534, %v913
      %v915 = vpop.f32.mrb[0].mxu0
      %916 = vmatprep.mubr.f32.mxu0 0.0
      %917 = vmatmul.mubr.f32.gmra.mrb[0].mxu0 %v715
      %v918 = vpop.f32.mrb[0].mxu0
      %v919 = vadd.f32 %v539, %v918
      %v920 = vpop.f32.mrb[0].mxu0
      %921 = vmatprep.mubr.f32.mxu0 0.0
      %922 = vmatmul.mubr.f32.gmra.mrb[0].mxu0 %v718
      %v923 = vpop.f32.mrb[0].mxu0
      %v924 = vadd.f32 %v544, %v923
      %v925 = vpop.f32.mrb[0].mxu0
      %926 = vmatprep.mubr.f32.mxu0 0.0
      %927 = vmatmul.mubr.f32.gmra.mrb[0].mxu0 %v721
      %v928 = vpop.f32.mrb[0].mxu0
      %v929 = vadd.f32 %v549, %v928
      %v930 = vpop.f32.mrb[0].mxu0
      %931 = vmatprep.mubr.f32.mxu0 0.0
      %932 = vmatmul.mubr.f32.gmra.mrb[0].mxu0 %v724
      %v933 = vpop.f32.mrb[0].mxu0
      %v934 = vadd.f32 %v554, %v933
      %v935 = vpop.f32.mrb[0].mxu0
      %936 = vmatprep.mubr.f32.mxu0 0.0
      %937 = vmatmul.mubr.f32.gmra.mrb[0].mxu0 %v727
      %v938 = vpop.f32.mrb[0].mxu0
      %v939 = vadd.f32 %v559, %v938
      %v940 = vpop.f32.mrb[0].mxu0
      %941 = vmatprep.mubr.f32.mxu0 0.0
      %942 = vmatmul.mubr.f32.gmra.mrb[0].mxu0 %v730
      %v943 = vpop.f32.mrb[0].mxu0
      %v944 = vadd.f32 %v564, %v943
      %v945 = vpop.f32.mrb[0].mxu0
      %946 = vmatprep.mubr.f32.mxu0 0.0
      %947 = vmatmul.mubr.f32.gmra.mrb[0].mxu0 %v733
      %v948 = vpop.f32.mrb[0].mxu0
      %v949 = vadd.f32 %v569, %v948
      %v950 = vpop.f32.mrb[0].mxu0
      %951 = vmatprep.mubr.f32.mxu0 0.0
      %952 = vmatmul.mubr.f32.gmra.mrb[0].mxu0 %v736
      %v953 = vpop.f32.mrb[0].mxu0
      %v954 = vadd.f32 %v574, %v953
      %v955 = vpop.f32.mrb[0].mxu0
      %956 = vmatprep.mubr.f32.mxu0 0.0
      %957 = vmatmul.mubr.f32.gmra.mrb[0].mxu0 %v739
      %v958 = vpop.f32.mrb[0].mxu0
      %v959 = vadd.f32 %v579, %v958
      %v960 = vpop.f32.mrb[0].mxu0
      %961 = vmatprep.mubr.f32.mxu0 0.0
      %962 = vmatmul.mubr.f32.gmra.mrb[0].mxu0 %v742
      %v963 = vpop.f32.mrb[0].mxu0
      %v964 = vadd.f32 %v584, %v963
      %v965 = vpop.f32.mrb[0].mxu0
      %966 = vmatprep.mubr.f32.mxu0 0.0
      %967 = vmatmul.mubr.f32.gmra.mrb[0].mxu0 %v745
      %v968 = vpop.f32.mrb[0].mxu0
      %v969 = vadd.f32 %v589, %v968
      %v970 = vpop.f32.mrb[0].mxu0
      %971 = vmatprep.mubr.f32.mxu0 0.0
      %972 = vmatmul.mubr.f32.gmra.mrb[0].mxu0 %v748
      %v973 = vpop.f32.mrb[0].mxu0
      %v974 = vadd.f32 %v594, %v973
      %v975 = vpop.f32.mrb[0].mxu0
      %976 = vmatprep.mubr.f32.mxu0 0.0
      %977 = vmatmul.mubr.f32.gmra.mrb[0].mxu0 %v751
      %v978 = vpop.f32.mrb[0].mxu0
      %v979 = vadd.f32 %v599, %v978
      %v980 = vpop.f32.mrb[0].mxu0
      %981 = vmatprep.mubr.f32.mxu0 0.0
      %982 = vmatmul.mubr.f32.gmra.mrb[0].mxu0 %v754
      %v983 = vpop.f32.mrb[0].mxu0
      %v984 = vadd.f32 %v604, %v983
      %v985 = vpop.f32.mrb[0].mxu0
      %986 = vmatprep.mubr.f32.mxu0 0.0
      %987 = vmatmul.mubr.f32.gmra.mrb[0].mxu0 %v757
      %v988 = vpop.f32.mrb[0].mxu0
      %v989 = vadd.f32 %v609, %v988
      %v990 = vpop.f32.mrb[0].mxu0
      %991 = vmatprep.mubr.f32.mxu0 0.0
      %992 = vmatmul.mubr.f32.gmra.mrb[0].mxu0 %v760
      %v993 = vpop.f32.mrb[0].mxu0
      %v994 = vadd.f32 %v614, %v993
      %v995 = vpop.f32.mrb[0].mxu0
      %996 = vmatprep.mubr.f32.mxu0 0.0
      %997 = vmatmul.mubr.f32.gmra.mrb[0].mxu0 %v763
      %v998 = vpop.f32.mrb[0].mxu0
      %v999 = vadd.f32 %v619, %v998
      %v1000 = vpop.f32.mrb[0].mxu0
      %1001 = vmatprep.mubr.f32.mxu0 0.0
      %1002 = vmatmul.mubr.f32.gmra.mrb[0].mxu0 %v766
      %v1003 = vpop.f32.mrb[0].mxu0
      %v1004 = vadd.f32 %v624, %v1003
      %v1005 = vpop.f32.mrb[0].mxu0
      %1006 = vmatprep.mubr.f32.mxu0 0.0
      %1007 = vmatmul.mubr.f32.gmra.mrb[0].mxu0 %v769
      %v1008 = vpop.f32.mrb[0].mxu0
      %v1009 = vadd.f32 %v629, %v1008
      %v1010 = vpop.f32.mrb[0].mxu0
      %1011 = vmatprep.mubr.f32.mxu0 0.0
      %1012 = vmatmul.mubr.f32.gmra.mrb[0].mxu0 %v772
      %v1013 = vpop.f32.mrb[0].mxu0
      %v1014 = vadd.f32 %v634, %v1013
      %v1015 = vpop.f32.mrb[0].mxu0
      %1016 = vmatprep.mubr.f32.mxu0 0.0
      %1017 = vmatmul.mubr.f32.gmra.mrb[0].mxu0 %v775
      %v1018 = vpop.f32.mrb[0].mxu0
      %v1019 = vadd.f32 %v639, %v1018
      %v1020 = vpop.f32.mrb[0].mxu0
      %1021 = vmatprep.mubr.f32.mxu0 0.0
      %1022 = vmatmul.mubr.f32.gmra.mrb[0].mxu0 %v778
      %v1023 = vpop.f32.mrb[0].mxu0
      %v1024 = vadd.f32 %v644, %v1023
      %v1025 = vpop.f32.mrb[0].mxu0
      %1026 = vmatprep.mubr.f32.mxu0 0.0
      %1027 = vmatmul.mubr.f32.gmra.mrb[0].mxu0 %v781
      %v1028 = vpop.f32.mrb[0].mxu0
      %v1029 = vadd.f32 %v649, %v1028
      %v1030 = vpop.f32.mrb[0].mxu0
      %1031 = vmatprep.mubr.f32.mxu0 0.0
      %1032 = vmatmul.mubr.f32.gmra.mrb[0].mxu0 %v784
      %v1033 = vpop.f32.mrb[0].mxu0
      %v1034 = vadd.f32 %v654, %v1033
      %v1035 = vpop.f32.mrb[0].mxu0
      %1036 = vmatprep.mubr.f32.mxu0 0.0
      %1037 = vmatmul.mubr.f32.gmra.mrb[0].mxu0 %v787
      %v1038 = vpop.f32.mrb[0].mxu0
      %v1039 = vadd.f32 %v659, %v1038
      %v1040 = vpop.f32.mrb[0].mxu0
      %1041 = vmatprep.mubr.f32.mxu0 0.0
      %1042 = vmatmul.mubr.f32.gmra.mrb[0].mxu0 %v790
      %v1043 = vpop.f32.mrb[0].mxu0
      %v1044 = vadd.f32 %v664, %v1043
      %v1045 = vpop.f32.mrb[0].mxu0
      %1046 = vmatprep.mubr.f32.mxu0 0.0
      %1047 = vmatmul.mubr.f32.gmra.mrb[0].mxu0 %v793
      %v1048 = vpop.f32.mrb[0].mxu0
      %v1049 = vadd.f32 %v669, %v1048
      %v1050 = vpop.f32.mrb[0].mxu0
      %1051 = vmatprep.mubr.f32.mxu0 0.0
      %1052 = vmatmul.mubr.f32.gmra.mrb[0].mxu0 %v796
      %v1053 = vpop.f32.mrb[0].mxu0
      %v1054 = vadd.f32 %v674, %v1053
      %v1055 = vpop.f32.mrb[0].mxu0
      %1056 = vmatprep.mubr.f32.mxu0 0.0
      %1057 = vmatmul.mubr.f32.gmra.mrb[0].mxu0 %v799
      %v1058 = vpop.f32.mrb[0].mxu0
      %v1059 = vadd.f32 %v679, %v1058
      %v1060 = vpop.f32.mrb[0].mxu0
      %1061 = vmatprep.mubr.f32.mxu0 0.0
      %1062 = vmatmul.mubr.f32.gmra.mrb[0].mxu0 %v802
      %v1063 = vpop.f32.mrb[0].mxu0
      %v1064 = vadd.f32 %v684, %v1063
      %v1065 = vpop.f32.mrb[0].mxu0
      %1066 = vdwg.mxu0
      %v1067 = vld [vmem:[%s206 + $0x12] sm:$0xff]
      %v1068 = vld [vmem:[%s206 + $0x1a] sm:$0xff]
      %v1069 = vld [vmem:[%s206 + $0x22] sm:$0xff]
      %v1070 = vld [vmem:[%s206 + $0x2a] sm:$0xff]
      %v1071 = vld [vmem:[%s206 + $0x32] sm:$0xff]
      %v1072 = vld [vmem:[%s206 + $0x3a] sm:$0xff]
      %v1073 = vld [vmem:[%s206 + $0x42] sm:$0xff]
      %v1074 = vld [vmem:[%s206 + $0x4a] sm:$0xff]
      %v1075 = vld [vmem:[%s206 + $0x52] sm:$0xff]
      %v1076 = vld [vmem:[%s206 + $0x5a] sm:$0xff]
      %v1077 = vld [vmem:[%s206 + $0x62] sm:$0xff]
      %v1078 = vld [vmem:[%s206 + $0x6a] sm:$0xff]
      %v1079 = vld [vmem:[%s206 + $0x72] sm:$0xff]
      %v1080 = vld [vmem:[%s206 + $0x7a] sm:$0xff]
      %v1081 = vld [vmem:[%s206 + $0x82] sm:$0xff]
      %v1082 = vld [vmem:[%s206 + $0x8a] sm:$0xff]
      %v1083 = vld [vmem:[%s206 + $0x92] sm:$0xff]
      %v1084 = vld [vmem:[%s206 + $0x9a] sm:$0xff]
      %v1085 = vld [vmem:[%s206 + $0xa2] sm:$0xff]
      %v1086 = vld [vmem:[%s206 + $0xaa] sm:$0xff]
      %v1087 = vld [vmem:[%s206 + $0xb2] sm:$0xff]
      %v1088 = vld [vmem:[%s206 + $0xba] sm:$0xff]
      %v1089 = vld [vmem:[%s206 + $0xc2] sm:$0xff]
      %v1090 = vld [vmem:[%s206 + $0xca] sm:$0xff]
      %v1091 = vld [vmem:[%s206 + $0xd2] sm:$0xff]
      %v1092 = vld [vmem:[%s206 + $0xda] sm:$0xff]
      %v1093 = vld [vmem:[%s206 + $0xe2] sm:$0xff]
      %v1094 = vld [vmem:[%s206 + $0xea] sm:$0xff]
      %v1095 = vld [vmem:[%s206 + $0xf2] sm:$0xff]
      %v1096 = vld [vmem:[%s206 + $0xfa] sm:$0xff]
      %v1097 = vld [vmem:[%s206 + $0x102] sm:$0xff]
      %v1098 = vld [vmem:[%s206 + $0x10a] sm:$0xff]
      %v1099 = vld [vmem:[%s206 + $0x112] sm:$0xff]
      %v1100 = vld [vmem:[%s206 + $0x11a] sm:$0xff]
      %v1101 = vld [vmem:[%s206 + $0x122] sm:$0xff]
      %v1102 = vld [vmem:[%s206 + $0x12a] sm:$0xff]
      %v1103 = vld [vmem:[%s206 + $0x132] sm:$0xff]
      %v1104 = vld [vmem:[%s206 + $0x13a] sm:$0xff]
      %v1105 = vld [vmem:[%s206 + $0x142] sm:$0x3]
      %s1106 = scalar_lea.vmem %s210, 32
      %v1107 = vld [vmem:[%s1106] sm:$0xff]
      %v1108 = vld [vmem:[%s1106 + $0x8] sm:$0xf]
      %v1110 = vsel %vm305, %v1067, 0
      %v1113 = vsel %vm305, %v1068, 0
      %v1116 = vsel %vm305, %v1069, 0
      %v1119 = vsel %vm305, %v1070, 0
      %v1122 = vsel %vm305, %v1071, 0
      %v1125 = vsel %vm305, %v1072, 0
      %v1128 = vsel %vm305, %v1073, 0
      %v1131 = vsel %vm305, %v1074, 0
      %v1134 = vsel %vm305, %v1075, 0
      %v1137 = vsel %vm305, %v1076, 0
      %v1140 = vsel %vm305, %v1077, 0
      %v1143 = vsel %vm305, %v1078, 0
      %v1146 = vsel %vm305, %v1079, 0
      %v1149 = vsel %vm305, %v1080, 0
      %v1152 = vsel %vm305, %v1081, 0
      %v1155 = vsel %vm305, %v1082, 0
      %v1158 = vsel %vm305, %v1083, 0
      %v1161 = vsel %vm305, %v1084, 0
      %v1164 = vsel %vm305, %v1085, 0
      %v1167 = vsel %vm305, %v1086, 0
      %v1170 = vsel %vm305, %v1087, 0
      %v1173 = vsel %vm305, %v1088, 0
      %v1176 = vsel %vm305, %v1089, 0
      %v1179 = vsel %vm305, %v1090, 0
      %v1182 = vsel %vm305, %v1091, 0
      %v1185 = vsel %vm305, %v1092, 0
      %v1188 = vsel %vm305, %v1093, 0
      %v1191 = vsel %vm305, %v1094, 0
      %v1194 = vsel %vm305, %v1095, 0
      %v1197 = vsel %vm305, %v1096, 0
      %v1200 = vsel %vm305, %v1097, 0
      %v1203 = vsel %vm305, %v1098, 0
      %v1206 = vsel %vm305, %v1099, 0
      %v1209 = vsel %vm305, %v1100, 0
      %v1212 = vsel %vm305, %v1101, 0
      %v1215 = vsel %vm305, %v1102, 0
      %v1218 = vsel %vm305, %v1103, 0
      %v1221 = vsel %vm305, %v1104, 0
      %v1224 = vsel %vm305, %v1105, 0
      %v1227 = vsel %vm423, %v1108, 0
      %1229 = vmatprep.subr.mxu0 0.0
      %1230 = vmatpush1.msra.mxu0 %v1107
      %1231 = vmatprep.subr.mxu0 0.0
      %1232 = vmatpush1.msra.mxu0 %v1227
      %1233 = vmatprep.subr.mxu0 0.0
      %1234 = vmatpush1.msra.mxu0 0.0
      %1235 = vmatprep.subr.mxu0 0.0
      %1236 = vmatpush1.msra.mxu0 0.0
      %1237 = vmatprep.subr.mxu0 0.0
      %1238 = vmatpush1.msra.mxu0 0.0
      %1239 = vmatprep.subr.mxu0 0.0
      %1240 = vmatpush1.msra.mxu0 0.0
      %1241 = vmatprep.subr.mxu0 0.0
      %1242 = vmatpush1.msra.mxu0 0.0
      %1243 = vmatprep.subr.mxu0 0.0
      %1244 = vmatpush1.msra.mxu0 0.0
      %1245 = vmatprep.subr.mxu0 0.0
      %1246 = vmatpush1.msra.mxu0 0.0
      %1247 = vmatprep.subr.mxu0 0.0
      %1248 = vmatpush1.msra.mxu0 0.0
      %1249 = vmatprep.subr.mxu0 0.0
      %1250 = vmatpush1.msra.mxu0 0.0
      %1251 = vmatprep.subr.mxu0 0.0
      %1252 = vmatpush1.msra.mxu0 0.0
      %1253 = vmatprep.subr.mxu0 0.0
      %1254 = vmatpush1.msra.mxu0 0.0
      %1255 = vmatprep.subr.mxu0 0.0
      %1256 = vmatpush1.msra.mxu0 0.0
      %1257 = vmatprep.subr.mxu0 0.0
      %1258 = vmatpush1.msra.mxu0 0.0
      %1259 = vmatprep.subr.mxu0 0.0
      %1260 = vmatpush1.msra.mxu0 0.0
      %1261 = vmatprep.subr.mxu0 0.0
      %1262 = vmatpush1.msra.mxu0 0.0
      %1263 = vmatprep.subr.mxu0 0.0
      %1264 = vmatpush1.msra.mxu0 0.0
      %1265 = vmatprep.subr.mxu0 0.0
      %1266 = vmatpush1.msra.mxu0 0.0
      %1267 = vmatprep.subr.mxu0 0.0
      %1268 = vmatpush1.msra.mxu0 0.0
      %1269 = vmatprep.subr.mxu0 0.0
      %1270 = vmatpush1.msra.mxu0 0.0
      %1271 = vmatprep.subr.mxu0 0.0
      %1272 = vmatpush1.msra.mxu0 0.0
      %1273 = vmatprep.subr.mxu0 0.0
      %1274 = vmatpush1.msra.mxu0 0.0
      %1275 = vmatprep.subr.mxu0 0.0
      %1276 = vmatpush1.msra.mxu0 0.0
      %1277 = vmatprep.subr.mxu0 0.0
      %1278 = vmatpush1.msra.mxu0 0.0
      %1279 = vmatprep.subr.mxu0 0.0
      %1280 = vmatpush1.msra.mxu0 0.0
      %1281 = vmatprep.subr.mxu0 0.0
      %1282 = vmatpush1.msra.mxu0 0.0
      %1283 = vmatprep.subr.mxu0 0.0
      %1284 = vmatpush1.msra.mxu0 0.0
      %1285 = vmatprep.subr.mxu0 0.0
      %1286 = vmatpush1.msra.mxu0 0.0
      %1287 = vmatprep.subr.mxu0 0.0
      %1288 = vmatpush1.msra.mxu0 0.0
      %1289 = vmatprep.subr.mxu0 0.0
      %1290 = vmatpush1.msra.mxu0 0.0
      %1291 = vmatprep.subr.mxu0 0.0
      %1292 = vmatpush1.msra.mxu0 0.0
      %1293 = vmatprep.mubr.f32.mxu0 0.0
      %1294 = vmatmul.mubr.f32.gmra.mrb[0].mxu0 %v1110
      %v1295 = vpop.f32.mrb[0].mxu0
      %v1296 = vadd.f32 0.0, %v1295
      %v1297 = vpop.f32.mrb[0].mxu0
      %1298 = vmatprep.mubr.f32.mxu0 0.0
      %1299 = vmatmul.mubr.f32.gmra.mrb[0].mxu0 %v1113
      %v1300 = vpop.f32.mrb[0].mxu0
      %v1301 = vadd.f32 0.0, %v1300
      %v1302 = vpop.f32.mrb[0].mxu0
      %1303 = vmatprep.mubr.f32.mxu0 0.0
      %1304 = vmatmul.mubr.f32.gmra.mrb[0].mxu0 %v1116
      %v1305 = vpop.f32.mrb[0].mxu0
      %v1306 = vadd.f32 0.0, %v1305
      %v1307 = vpop.f32.mrb[0].mxu0
      %1308 = vmatprep.mubr.f32.mxu0 0.0
      %1309 = vmatmul.mubr.f32.gmra.mrb[0].mxu0 %v1119
      %v1310 = vpop.f32.mrb[0].mxu0
      %v1311 = vadd.f32 0.0, %v1310
      %v1312 = vpop.f32.mrb[0].mxu0
      %1313 = vmatprep.mubr.f32.mxu0 0.0
      %1314 = vmatmul.mubr.f32.gmra.mrb[0].mxu0 %v1122
      %v1315 = vpop.f32.mrb[0].mxu0
      %v1316 = vadd.f32 0.0, %v1315
      %v1317 = vpop.f32.mrb[0].mxu0
      %1318 = vmatprep.mubr.f32.mxu0 0.0
      %1319 = vmatmul.mubr.f32.gmra.mrb[0].mxu0 %v1125
      %v1320 = vpop.f32.mrb[0].mxu0
      %v1321 = vadd.f32 0.0, %v1320
      %v1322 = vpop.f32.mrb[0].mxu0
      %1323 = vmatprep.mubr.f32.mxu0 0.0
      %1324 = vmatmul.mubr.f32.gmra.mrb[0].mxu0 %v1128
      %v1325 = vpop.f32.mrb[0].mxu0
      %v1326 = vadd.f32 0.0, %v1325
      %v1327 = vpop.f32.mrb[0].mxu0
      %1328 = vmatprep.mubr.f32.mxu0 0.0
      %1329 = vmatmul.mubr.f32.gmra.mrb[0].mxu0 %v1131
      %v1330 = vpop.f32.mrb[0].mxu0
      %v1331 = vadd.f32 0.0, %v1330
      %v1332 = vpop.f32.mrb[0].mxu0
      %1333 = vmatprep.mubr.f32.mxu0 0.0
      %1334 = vmatmul.mubr.f32.gmra.mrb[0].mxu0 %v1134
      %v1335 = vpop.f32.mrb[0].mxu0
      %v1336 = vadd.f32 0.0, %v1335
      %v1337 = vpop.f32.mrb[0].mxu0
      %1338 = vmatprep.mubr.f32.mxu0 0.0
      %1339 = vmatmul.mubr.f32.gmra.mrb[0].mxu0 %v1137
      %v1340 = vpop.f32.mrb[0].mxu0
      %v1341 = vadd.f32 0.0, %v1340
      %v1342 = vpop.f32.mrb[0].mxu0
      %1343 = vmatprep.mubr.f32.mxu0 0.0
      %1344 = vmatmul.mubr.f32.gmra.mrb[0].mxu0 %v1140
      %v1345 = vpop.f32.mrb[0].mxu0
      %v1346 = vadd.f32 0.0, %v1345
      %v1347 = vpop.f32.mrb[0].mxu0
      %1348 = vmatprep.mubr.f32.mxu0 0.0
      %1349 = vmatmul.mubr.f32.gmra.mrb[0].mxu0 %v1143
      %v1350 = vpop.f32.mrb[0].mxu0
      %v1351 = vadd.f32 0.0, %v1350
      %v1352 = vpop.f32.mrb[0].mxu0
      %1353 = vmatprep.mubr.f32.mxu0 0.0
      %1354 = vmatmul.mubr.f32.gmra.mrb[0].mxu0 %v1146
      %v1355 = vpop.f32.mrb[0].mxu0
      %v1356 = vadd.f32 0.0, %v1355
      %v1357 = vpop.f32.mrb[0].mxu0
      %1358 = vmatprep.mubr.f32.mxu0 0.0
      %1359 = vmatmul.mubr.f32.gmra.mrb[0].mxu0 %v1149
      %v1360 = vpop.f32.mrb[0].mxu0
      %v1361 = vadd.f32 0.0, %v1360
      %v1362 = vpop.f32.mrb[0].mxu0
      %1363 = vmatprep.mubr.f32.mxu0 0.0
      %1364 = vmatmul.mubr.f32.gmra.mrb[0].mxu0 %v1152
      %v1365 = vpop.f32.mrb[0].mxu0
      %v1366 = vadd.f32 0.0, %v1365
      %v1367 = vpop.f32.mrb[0].mxu0
      %1368 = vmatprep.mubr.f32.mxu0 0.0
      %1369 = vmatmul.mubr.f32.gmra.mrb[0].mxu0 %v1155
      %v1370 = vpop.f32.mrb[0].mxu0
      %v1371 = vadd.f32 0.0, %v1370
      %v1372 = vpop.f32.mrb[0].mxu0
      %1373 = vmatprep.mubr.f32.mxu0 0.0
      %1374 = vmatmul.mubr.f32.gmra.mrb[0].mxu0 %v1158
      %v1375 = vpop.f32.mrb[0].mxu0
      %v1376 = vadd.f32 0.0, %v1375
      %v1377 = vpop.f32.mrb[0].mxu0
      %1378 = vmatprep.mubr.f32.mxu0 0.0
      %1379 = vmatmul.mubr.f32.gmra.mrb[0].mxu0 %v1161
      %v1380 = vpop.f32.mrb[0].mxu0
      %v1381 = vadd.f32 0.0, %v1380
      %v1382 = vpop.f32.mrb[0].mxu0
      %1383 = vmatprep.mubr.f32.mxu0 0.0
      %1384 = vmatmul.mubr.f32.gmra.mrb[0].mxu0 %v1164
      %v1385 = vpop.f32.mrb[0].mxu0
      %v1386 = vadd.f32 0.0, %v1385
      %v1387 = vpop.f32.mrb[0].mxu0
      %1388 = vmatprep.mubr.f32.mxu0 0.0
      %1389 = vmatmul.mubr.f32.gmra.mrb[0].mxu0 %v1167
      %v1390 = vpop.f32.mrb[0].mxu0
      %v1391 = vadd.f32 0.0, %v1390
      %v1392 = vpop.f32.mrb[0].mxu0
      %1393 = vmatprep.mubr.f32.mxu0 0.0
      %1394 = vmatmul.mubr.f32.gmra.mrb[0].mxu0 %v1170
      %v1395 = vpop.f32.mrb[0].mxu0
      %v1396 = vadd.f32 0.0, %v1395
      %v1397 = vpop.f32.mrb[0].mxu0
      %1398 = vmatprep.mubr.f32.mxu0 0.0
      %1399 = vmatmul.mubr.f32.gmra.mrb[0].mxu0 %v1173
      %v1400 = vpop.f32.mrb[0].mxu0
      %v1401 = vadd.f32 0.0, %v1400
      %v1402 = vpop.f32.mrb[0].mxu0
      %1403 = vmatprep.mubr.f32.mxu0 0.0
      %1404 = vmatmul.mubr.f32.gmra.mrb[0].mxu0 %v1176
      %v1405 = vpop.f32.mrb[0].mxu0
      %v1406 = vadd.f32 0.0, %v1405
      %v1407 = vpop.f32.mrb[0].mxu0
      %1408 = vmatprep.mubr.f32.mxu0 0.0
      %1409 = vmatmul.mubr.f32.gmra.mrb[0].mxu0 %v1179
      %v1410 = vpop.f32.mrb[0].mxu0
      %v1411 = vadd.f32 0.0, %v1410
      %v1412 = vpop.f32.mrb[0].mxu0
      %1413 = vmatprep.mubr.f32.mxu0 0.0
      %1414 = vmatmul.mubr.f32.gmra.mrb[0].mxu0 %v1182
      %v1415 = vpop.f32.mrb[0].mxu0
      %v1416 = vadd.f32 0.0, %v1415
      %v1417 = vpop.f32.mrb[0].mxu0
      %1418 = vmatprep.mubr.f32.mxu0 0.0
      %1419 = vmatmul.mubr.f32.gmra.mrb[0].mxu0 %v1185
      %v1420 = vpop.f32.mrb[0].mxu0
      %v1421 = vadd.f32 0.0, %v1420
      %v1422 = vpop.f32.mrb[0].mxu0
      %1423 = vmatprep.mubr.f32.mxu0 0.0
      %1424 = vmatmul.mubr.f32.gmra.mrb[0].mxu0 %v1188
      %v1425 = vpop.f32.mrb[0].mxu0
      %v1426 = vadd.f32 0.0, %v1425
      %v1427 = vpop.f32.mrb[0].mxu0
      %1428 = vmatprep.mubr.f32.mxu0 0.0
      %1429 = vmatmul.mubr.f32.gmra.mrb[0].mxu0 %v1191
      %v1430 = vpop.f32.mrb[0].mxu0
      %v1431 = vadd.f32 0.0, %v1430
      %v1432 = vpop.f32.mrb[0].mxu0
      %1433 = vmatprep.mubr.f32.mxu0 0.0
      %1434 = vmatmul.mubr.f32.gmra.mrb[0].mxu0 %v1194
      %v1435 = vpop.f32.mrb[0].mxu0
      %v1436 = vadd.f32 0.0, %v1435
      %v1437 = vpop.f32.mrb[0].mxu0
      %1438 = vmatprep.mubr.f32.mxu0 0.0
      %1439 = vmatmul.mubr.f32.gmra.mrb[0].mxu0 %v1197
      %v1440 = vpop.f32.mrb[0].mxu0
      %v1441 = vadd.f32 0.0, %v1440
      %v1442 = vpop.f32.mrb[0].mxu0
      %1443 = vmatprep.mubr.f32.mxu0 0.0
      %1444 = vmatmul.mubr.f32.gmra.mrb[0].mxu0 %v1200
      %v1445 = vpop.f32.mrb[0].mxu0
      %v1446 = vadd.f32 0.0, %v1445
      %v1447 = vpop.f32.mrb[0].mxu0
      %1448 = vmatprep.mubr.f32.mxu0 0.0
      %1449 = vmatmul.mubr.f32.gmra.mrb[0].mxu0 %v1203
      %v1450 = vpop.f32.mrb[0].mxu0
      %v1451 = vadd.f32 0.0, %v1450
      %v1452 = vpop.f32.mrb[0].mxu0
      %1453 = vmatprep.mubr.f32.mxu0 0.0
      %1454 = vmatmul.mubr.f32.gmra.mrb[0].mxu0 %v1206
      %v1455 = vpop.f32.mrb[0].mxu0
      %v1456 = vadd.f32 0.0, %v1455
      %v1457 = vpop.f32.mrb[0].mxu0
      %1458 = vmatprep.mubr.f32.mxu0 0.0
      %1459 = vmatmul.mubr.f32.gmra.mrb[0].mxu0 %v1209
      %v1460 = vpop.f32.mrb[0].mxu0
      %v1461 = vadd.f32 0.0, %v1460
      %v1462 = vpop.f32.mrb[0].mxu0
      %1463 = vmatprep.mubr.f32.mxu0 0.0
      %1464 = vmatmul.mubr.f32.gmra.mrb[0].mxu0 %v1212
      %v1465 = vpop.f32.mrb[0].mxu0
      %v1466 = vadd.f32 0.0, %v1465
      %v1467 = vpop.f32.mrb[0].mxu0
      %1468 = vmatprep.mubr.f32.mxu0 0.0
      %1469 = vmatmul.mubr.f32.gmra.mrb[0].mxu0 %v1215
      %v1470 = vpop.f32.mrb[0].mxu0
      %v1471 = vadd.f32 0.0, %v1470
      %v1472 = vpop.f32.mrb[0].mxu0
      %1473 = vmatprep.mubr.f32.mxu0 0.0
      %1474 = vmatmul.mubr.f32.gmra.mrb[0].mxu0 %v1218
      %v1475 = vpop.f32.mrb[0].mxu0
      %v1476 = vadd.f32 0.0, %v1475
      %v1477 = vpop.f32.mrb[0].mxu0
      %1478 = vmatprep.mubr.f32.mxu0 0.0
      %1479 = vmatmul.mubr.f32.gmra.mrb[0].mxu0 %v1221
      %v1480 = vpop.f32.mrb[0].mxu0
      %v1481 = vadd.f32 0.0, %v1480
      %v1482 = vpop.f32.mrb[0].mxu0
      %1483 = vmatprep.mubr.f32.mxu0 0.0
      %1484 = vmatmul.mubr.f32.gmra.mrb[0].mxu0 %v1224
      %v1485 = vpop.f32.mrb[0].mxu0
      %v1486 = vadd.f32 0.0, %v1485
      %v1487 = vpop.f32.mrb[0].mxu0
      %1488 = vdwg.mxu0
      %v1489 = vadd.f32 %v874, %v1296
      %v1490 = vadd.f32 %v879, %v1301
      %v1491 = vadd.f32 %v884, %v1306
      %v1492 = vadd.f32 %v889, %v1311
      %v1493 = vadd.f32 %v894, %v1316
      %v1494 = vadd.f32 %v899, %v1321
      %v1495 = vadd.f32 %v904, %v1326
      %v1496 = vadd.f32 %v909, %v1331
      %v1497 = vadd.f32 %v914, %v1336
      %v1498 = vadd.f32 %v919, %v1341
      %v1499 = vadd.f32 %v924, %v1346
      %v1500 = vadd.f32 %v929, %v1351
      %v1501 = vadd.f32 %v934, %v1356
      %v1502 = vadd.f32 %v939, %v1361
      %v1503 = vadd.f32 %v944, %v1366
      %v1504 = vadd.f32 %v949, %v1371
      %v1505 = vadd.f32 %v954, %v1376
      %v1506 = vadd.f32 %v959, %v1381
      %v1507 = vadd.f32 %v964, %v1386
      %v1508 = vadd.f32 %v969, %v1391
      %v1509 = vadd.f32 %v974, %v1396
      %v1510 = vadd.f32 %v979, %v1401
      %v1511 = vadd.f32 %v984, %v1406
      %v1512 = vadd.f32 %v989, %v1411
      %v1513 = vadd.f32 %v994, %v1416
      %v1514 = vadd.f32 %v999, %v1421
      %v1515 = vadd.f32 %v1004, %v1426
      %v1516 = vadd.f32 %v1009, %v1431
      %v1517 = vadd.f32 %v1014, %v1436
      %v1518 = vadd.f32 %v1019, %v1441
      %v1519 = vadd.f32 %v1024, %v1446
      %v1520 = vadd.f32 %v1029, %v1451
      %v1521 = vadd.f32 %v1034, %v1456
      %v1522 = vadd.f32 %v1039, %v1461
      %v1523 = vadd.f32 %v1044, %v1466
      %v1524 = vadd.f32 %v1049, %v1471
      %v1525 = vadd.f32 %v1054, %v1476
      %v1526 = vadd.f32 %v1059, %v1481
      %v1527 = vadd.f32 %v1064, %v1486
      %v1528 = vld [vmem:[%s206 + $0x13] sm:$0xff]
      %v1529 = vld [vmem:[%s206 + $0x1b] sm:$0xff]
      %v1530 = vld [vmem:[%s206 + $0x23] sm:$0xff]
      %v1531 = vld [vmem:[%s206 + $0x2b] sm:$0xff]
      %v1532 = vld [vmem:[%s206 + $0x33] sm:$0xff]
      %v1533 = vld [vmem:[%s206 + $0x3b] sm:$0xff]
      %v1534 = vld [vmem:[%s206 + $0x43] sm:$0xff]
      %v1535 = vld [vmem:[%s206 + $0x4b] sm:$0xff]
      %v1536 = vld [vmem:[%s206 + $0x53] sm:$0xff]
      %v1537 = vld [vmem:[%s206 + $0x5b] sm:$0xff]
      %v1538 = vld [vmem:[%s206 + $0x63] sm:$0xff]
      %v1539 = vld [vmem:[%s206 + $0x6b] sm:$0xff]
      %v1540 = vld [vmem:[%s206 + $0x73] sm:$0xff]
      %v1541 = vld [vmem:[%s206 + $0x7b] sm:$0xff]
      %v1542 = vld [vmem:[%s206 + $0x83] sm:$0xff]
      %v1543 = vld [vmem:[%s206 + $0x8b] sm:$0xff]
      %v1544 = vld [vmem:[%s206 + $0x93] sm:$0xff]
      %v1545 = vld [vmem:[%s206 + $0x9b] sm:$0xff]
      %v1546 = vld [vmem:[%s206 + $0xa3] sm:$0xff]
      %v1547 = vld [vmem:[%s206 + $0xab] sm:$0xff]
      %v1548 = vld [vmem:[%s206 + $0xb3] sm:$0xff]
      %v1549 = vld [vmem:[%s206 + $0xbb] sm:$0xff]
      %v1550 = vld [vmem:[%s206 + $0xc3] sm:$0xff]
      %v1551 = vld [vmem:[%s206 + $0xcb] sm:$0xff]
      %v1552 = vld [vmem:[%s206 + $0xd3] sm:$0xff]
      %v1553 = vld [vmem:[%s206 + $0xdb] sm:$0xff]
      %v1554 = vld [vmem:[%s206 + $0xe3] sm:$0xff]
      %v1555 = vld [vmem:[%s206 + $0xeb] sm:$0xff]
      %v1556 = vld [vmem:[%s206 + $0xf3] sm:$0xff]
      %v1557 = vld [vmem:[%s206 + $0xfb] sm:$0xff]
      %v1558 = vld [vmem:[%s206 + $0x103] sm:$0xff]
      %v1559 = vld [vmem:[%s206 + $0x10b] sm:$0xff]
      %v1560 = vld [vmem:[%s206 + $0x113] sm:$0xff]
      %v1561 = vld [vmem:[%s206 + $0x11b] sm:$0xff]
      %v1562 = vld [vmem:[%s206 + $0x123] sm:$0xff]
      %v1563 = vld [vmem:[%s206 + $0x12b] sm:$0xff]
      %v1564 = vld [vmem:[%s206 + $0x133] sm:$0xff]
      %v1565 = vld [vmem:[%s206 + $0x13b] sm:$0xff]
      %v1566 = vld [vmem:[%s206 + $0x143] sm:$0x3]
      %s1567 = scalar_lea.vmem %s210, 48
      %v1568 = vld [vmem:[%s1567] sm:$0xff]
      %v1569 = vld [vmem:[%s1567 + $0x8] sm:$0xf]
      %v1571 = vsel %vm305, %v1528, 0
      %v1574 = vsel %vm305, %v1529, 0
      %v1577 = vsel %vm305, %v1530, 0
      %v1580 = vsel %vm305, %v1531, 0
      %v1583 = vsel %vm305, %v1532, 0
      %v1586 = vsel %vm305, %v1533, 0
      %v1589 = vsel %vm305, %v1534, 0
      %v1592 = vsel %vm305, %v1535, 0
      %v1595 = vsel %vm305, %v1536, 0
      %v1598 = vsel %vm305, %v1537, 0
      %v1601 = vsel %vm305, %v1538, 0
      %v1604 = vsel %vm305, %v1539, 0
      %v1607 = vsel %vm305, %v1540, 0
      %v1610 = vsel %vm305, %v1541, 0
      %v1613 = vsel %vm305, %v1542, 0
      %v1616 = vsel %vm305, %v1543, 0
      %v1619 = vsel %vm305, %v1544, 0
      %v1622 = vsel %vm305, %v1545, 0
      %v1625 = vsel %vm305, %v1546, 0
      %v1628 = vsel %vm305, %v1547, 0
      %v1631 = vsel %vm305, %v1548, 0
      %v1634 = vsel %vm305, %v1549, 0
      %v1637 = vsel %vm305, %v1550, 0
      %v1640 = vsel %vm305, %v1551, 0
      %v1643 = vsel %vm305, %v1552, 0
      %v1646 = vsel %vm305, %v1553, 0
      %v1649 = vsel %vm305, %v1554, 0
      %v1652 = vsel %vm305, %v1555, 0
      %v1655 = vsel %vm305, %v1556, 0
      %v1658 = vsel %vm305, %v1557, 0
      %v1661 = vsel %vm305, %v1558, 0
      %v1664 = vsel %vm305, %v1559, 0
      %v1667 = vsel %vm305, %v1560, 0
      %v1670 = vsel %vm305, %v1561, 0
      %v1673 = vsel %vm305, %v1562, 0
      %v1676 = vsel %vm305, %v1563, 0
      %v1679 = vsel %vm305, %v1564, 0
      %v1682 = vsel %vm305, %v1565, 0
      %v1685 = vsel %vm305, %v1566, 0
      %v1688 = vsel %vm423, %v1569, 0
      %1690 = vmatprep.subr.mxu0 0.0
      %1691 = vmatpush1.msra.mxu0 %v1568
      %1692 = vmatprep.subr.mxu0 0.0
      %1693 = vmatpush1.msra.mxu0 %v1688
      %1694 = vmatprep.subr.mxu0 0.0
      %1695 = vmatpush1.msra.mxu0 0.0
      %1696 = vmatprep.subr.mxu0 0.0
      %1697 = vmatpush1.msra.mxu0 0.0
      %1698 = vmatprep.subr.mxu0 0.0
      %1699 = vmatpush1.msra.mxu0 0.0
      %1700 = vmatprep.subr.mxu0 0.0
      %1701 = vmatpush1.msra.mxu0 0.0
      %1702 = vmatprep.subr.mxu0 0.0
      %1703 = vmatpush1.msra.mxu0 0.0
      %1704 = vmatprep.subr.mxu0 0.0
      %1705 = vmatpush1.msra.mxu0 0.0
      %1706 = vmatprep.subr.mxu0 0.0
      %1707 = vmatpush1.msra.mxu0 0.0
      %1708 = vmatprep.subr.mxu0 0.0
      %1709 = vmatpush1.msra.mxu0 0.0
      %1710 = vmatprep.subr.mxu0 0.0
      %1711 = vmatpush1.msra.mxu0 0.0
      %1712 = vmatprep.subr.mxu0 0.0
      %1713 = vmatpush1.msra.mxu0 0.0
      %1714 = vmatprep.subr.mxu0 0.0
      %1715 = vmatpush1.msra.mxu0 0.0
      %1716 = vmatprep.subr.mxu0 0.0
      %1717 = vmatpush1.msra.mxu0 0.0
      %1718 = vmatprep.subr.mxu0 0.0
      %1719 = vmatpush1.msra.mxu0 0.0
      %1720 = vmatprep.subr.mxu0 0.0
      %1721 = vmatpush1.msra.mxu0 0.0
      %1722 = vmatprep.subr.mxu0 0.0
      %1723 = vmatpush1.msra.mxu0 0.0
      %1724 = vmatprep.subr.mxu0 0.0
      %1725 = vmatpush1.msra.mxu0 0.0
      %1726 = vmatprep.subr.mxu0 0.0
      %1727 = vmatpush1.msra.mxu0 0.0
      %1728 = vmatprep.subr.mxu0 0.0
      %1729 = vmatpush1.msra.mxu0 0.0
      %1730 = vmatprep.subr.mxu0 0.0
      %1731 = vmatpush1.msra.mxu0 0.0
      %1732 = vmatprep.subr.mxu0 0.0
      %1733 = vmatpush1.msra.mxu0 0.0
      %1734 = vmatprep.subr.mxu0 0.0
      %1735 = vmatpush1.msra.mxu0 0.0
      %1736 = vmatprep.subr.mxu0 0.0
      %1737 = vmatpush1.msra.mxu0 0.0
      %1738 = vmatprep.subr.mxu0 0.0
      %1739 = vmatpush1.msra.mxu0 0.0
      %1740 = vmatprep.subr.mxu0 0.0
      %1741 = vmatpush1.msra.mxu0 0.0
      %1742 = vmatprep.subr.mxu0 0.0
      %1743 = vmatpush1.msra.mxu0 0.0
      %1744 = vmatprep.subr.mxu0 0.0
      %1745 = vmatpush1.msra.mxu0 0.0
      %1746 = vmatprep.subr.mxu0 0.0
      %1747 = vmatpush1.msra.mxu0 0.0
      %1748 = vmatprep.subr.mxu0 0.0
      %1749 = vmatpush1.msra.mxu0 0.0
      %1750 = vmatprep.subr.mxu0 0.0
      %1751 = vmatpush1.msra.mxu0 0.0
      %1752 = vmatprep.subr.mxu0 0.0
      %1753 = vmatpush1.msra.mxu0 0.0
      %1754 = vmatprep.mubr.f32.mxu0 0.0
      %1755 = vmatmul.mubr.f32.gmra.mrb[0].mxu0 %v1571
      %v1756 = vpop.f32.mrb[0].mxu0
      %v1757 = vadd.f32 0.0, %v1756
      %v1758 = vpop.f32.mrb[0].mxu0
      %1759 = vmatprep.mubr.f32.mxu0 0.0
      %1760 = vmatmul.mubr.f32.gmra.mrb[0].mxu0 %v1574
      %v1761 = vpop.f32.mrb[0].mxu0
      %v1762 = vadd.f32 0.0, %v1761
      %v1763 = vpop.f32.mrb[0].mxu0
      %1764 = vmatprep.mubr.f32.mxu0 0.0
      %1765 = vmatmul.mubr.f32.gmra.mrb[0].mxu0 %v1577
      %v1766 = vpop.f32.mrb[0].mxu0
      %v1767 = vadd.f32 0.0, %v1766
      %v1768 = vpop.f32.mrb[0].mxu0
      %1769 = vmatprep.mubr.f32.mxu0 0.0
      %1770 = vmatmul.mubr.f32.gmra.mrb[0].mxu0 %v1580
      %v1771 = vpop.f32.mrb[0].mxu0
      %v1772 = vadd.f32 0.0, %v1771
      %v1773 = vpop.f32.mrb[0].mxu0
      %1774 = vmatprep.mubr.f32.mxu0 0.0
      %1775 = vmatmul.mubr.f32.gmra.mrb[0].mxu0 %v1583
      %v1776 = vpop.f32.mrb[0].mxu0
      %v1777 = vadd.f32 0.0, %v1776
      %v1778 = vpop.f32.mrb[0].mxu0
      %1779 = vmatprep.mubr.f32.mxu0 0.0
      %1780 = vmatmul.mubr.f32.gmra.mrb[0].mxu0 %v1586
      %v1781 = vpop.f32.mrb[0].mxu0
      %v1782 = vadd.f32 0.0, %v1781
      %v1783 = vpop.f32.mrb[0].mxu0
      %1784 = vmatprep.mubr.f32.mxu0 0.0
      %1785 = vmatmul.mubr.f32.gmra.mrb[0].mxu0 %v1589
      %v1786 = vpop.f32.mrb[0].mxu0
      %v1787 = vadd.f32 0.0, %v1786
      %v1788 = vpop.f32.mrb[0].mxu0
      %1789 = vmatprep.mubr.f32.mxu0 0.0
      %1790 = vmatmul.mubr.f32.gmra.mrb[0].mxu0 %v1592
      %v1791 = vpop.f32.mrb[0].mxu0
      %v1792 = vadd.f32 0.0, %v1791
      %v1793 = vpop.f32.mrb[0].mxu0
      %1794 = vmatprep.mubr.f32.mxu0 0.0
      %1795 = vmatmul.mubr.f32.gmra.mrb[0].mxu0 %v1595
      %v1796 = vpop.f32.mrb[0].mxu0
      %v1797 = vadd.f32 0.0, %v1796
      %v1798 = vpop.f32.mrb[0].mxu0
      %1799 = vmatprep.mubr.f32.mxu0 0.0
      %1800 = vmatmul.mubr.f32.gmra.mrb[0].mxu0 %v1598
      %v1801 = vpop.f32.mrb[0].mxu0
      %v1802 = vadd.f32 0.0, %v1801
      %v1803 = vpop.f32.mrb[0].mxu0
      %1804 = vmatprep.mubr.f32.mxu0 0.0
      %1805 = vmatmul.mubr.f32.gmra.mrb[0].mxu0 %v1601
      %v1806 = vpop.f32.mrb[0].mxu0
      %v1807 = vadd.f32 0.0, %v1806
      %v1808 = vpop.f32.mrb[0].mxu0
      %1809 = vmatprep.mubr.f32.mxu0 0.0
      %1810 = vmatmul.mubr.f32.gmra.mrb[0].mxu0 %v1604
      %v1811 = vpop.f32.mrb[0].mxu0
      %v1812 = vadd.f32 0.0, %v1811
      %v1813 = vpop.f32.mrb[0].mxu0
      %1814 = vmatprep.mubr.f32.mxu0 0.0
      %1815 = vmatmul.mubr.f32.gmra.mrb[0].mxu0 %v1607
      %v1816 = vpop.f32.mrb[0].mxu0
      %v1817 = vadd.f32 0.0, %v1816
      %v1818 = vpop.f32.mrb[0].mxu0
      %1819 = vmatprep.mubr.f32.mxu0 0.0
      %1820 = vmatmul.mubr.f32.gmra.mrb[0].mxu0 %v1610
      %v1821 = vpop.f32.mrb[0].mxu0
      %v1822 = vadd.f32 0.0, %v1821
      %v1823 = vpop.f32.mrb[0].mxu0
      %1824 = vmatprep.mubr.f32.mxu0 0.0
      %1825 = vmatmul.mubr.f32.gmra.mrb[0].mxu0 %v1613
      %v1826 = vpop.f32.mrb[0].mxu0
      %v1827 = vadd.f32 0.0, %v1826
      %v1828 = vpop.f32.mrb[0].mxu0
      %1829 = vmatprep.mubr.f32.mxu0 0.0
      %1830 = vmatmul.mubr.f32.gmra.mrb[0].mxu0 %v1616
      %v1831 = vpop.f32.mrb[0].mxu0
      %v1832 = vadd.f32 0.0, %v1831
      %v1833 = vpop.f32.mrb[0].mxu0
      %1834 = vmatprep.mubr.f32.mxu0 0.0
      %1835 = vmatmul.mubr.f32.gmra.mrb[0].mxu0 %v1619
      %v1836 = vpop.f32.mrb[0].mxu0
      %v1837 = vadd.f32 0.0, %v1836
      %v1838 = vpop.f32.mrb[0].mxu0
      %1839 = vmatprep.mubr.f32.mxu0 0.0
      %1840 = vmatmul.mubr.f32.gmra.mrb[0].mxu0 %v1622
      %v1841 = vpop.f32.mrb[0].mxu0
      %v1842 = vadd.f32 0.0, %v1841
      %v1843 = vpop.f32.mrb[0].mxu0
      %1844 = vmatprep.mubr.f32.mxu0 0.0
      %1845 = vmatmul.mubr.f32.gmra.mrb[0].mxu0 %v1625
      %v1846 = vpop.f32.mrb[0].mxu0
      %v1847 = vadd.f32 0.0, %v1846
      %v1848 = vpop.f32.mrb[0].mxu0
      %1849 = vmatprep.mubr.f32.mxu0 0.0
      %1850 = vmatmul.mubr.f32.gmra.mrb[0].mxu0 %v1628
      %v1851 = vpop.f32.mrb[0].mxu0
      %v1852 = vadd.f32 0.0, %v1851
      %v1853 = vpop.f32.mrb[0].mxu0
      %1854 = vmatprep.mubr.f32.mxu0 0.0
      %1855 = vmatmul.mubr.f32.gmra.mrb[0].mxu0 %v1631
      %v1856 = vpop.f32.mrb[0].mxu0
      %v1857 = vadd.f32 0.0, %v1856
      %v1858 = vpop.f32.mrb[0].mxu0
      %1859 = vmatprep.mubr.f32.mxu0 0.0
      %1860 = vmatmul.mubr.f32.gmra.mrb[0].mxu0 %v1634
      %v1861 = vpop.f32.mrb[0].mxu0
      %v1862 = vadd.f32 0.0, %v1861
      %v1863 = vpop.f32.mrb[0].mxu0
      %1864 = vmatprep.mubr.f32.mxu0 0.0
      %1865 = vmatmul.mubr.f32.gmra.mrb[0].mxu0 %v1637
      %v1866 = vpop.f32.mrb[0].mxu0
      %v1867 = vadd.f32 0.0, %v1866
      %v1868 = vpop.f32.mrb[0].mxu0
      %1869 = vmatprep.mubr.f32.mxu0 0.0
      %1870 = vmatmul.mubr.f32.gmra.mrb[0].mxu0 %v1640
      %v1871 = vpop.f32.mrb[0].mxu0
      %v1872 = vadd.f32 0.0, %v1871
      %v1873 = vpop.f32.mrb[0].mxu0
      %1874 = vmatprep.mubr.f32.mxu0 0.0
      %1875 = vmatmul.mubr.f32.gmra.mrb[0].mxu0 %v1643
      %v1876 = vpop.f32.mrb[0].mxu0
      %v1877 = vadd.f32 0.0, %v1876
      %v1878 = vpop.f32.mrb[0].mxu0
      %1879 = vmatprep.mubr.f32.mxu0 0.0
      %1880 = vmatmul.mubr.f32.gmra.mrb[0].mxu0 %v1646
      %v1881 = vpop.f32.mrb[0].mxu0
      %v1882 = vadd.f32 0.0, %v1881
      %v1883 = vpop.f32.mrb[0].mxu0
      %1884 = vmatprep.mubr.f32.mxu0 0.0
      %1885 = vmatmul.mubr.f32.gmra.mrb[0].mxu0 %v1649
      %v1886 = vpop.f32.mrb[0].mxu0
      %v1887 = vadd.f32 0.0, %v1886
      %v1888 = vpop.f32.mrb[0].mxu0
      %1889 = vmatprep.mubr.f32.mxu0 0.0
      %1890 = vmatmul.mubr.f32.gmra.mrb[0].mxu0 %v1652
      %v1891 = vpop.f32.mrb[0].mxu0
      %v1892 = vadd.f32 0.0, %v1891
      %v1893 = vpop.f32.mrb[0].mxu0
      %1894 = vmatprep.mubr.f32.mxu0 0.0
      %1895 = vmatmul.mubr.f32.gmra.mrb[0].mxu0 %v1655
      %v1896 = vpop.f32.mrb[0].mxu0
      %v1897 = vadd.f32 0.0, %v1896
      %v1898 = vpop.f32.mrb[0].mxu0
      %1899 = vmatprep.mubr.f32.mxu0 0.0
      %1900 = vmatmul.mubr.f32.gmra.mrb[0].mxu0 %v1658
      %v1901 = vpop.f32.mrb[0].mxu0
      %v1902 = vadd.f32 0.0, %v1901
      %v1903 = vpop.f32.mrb[0].mxu0
      %1904 = vmatprep.mubr.f32.mxu0 0.0
      %1905 = vmatmul.mubr.f32.gmra.mrb[0].mxu0 %v1661
      %v1906 = vpop.f32.mrb[0].mxu0
      %v1907 = vadd.f32 0.0, %v1906
      %v1908 = vpop.f32.mrb[0].mxu0
      %1909 = vmatprep.mubr.f32.mxu0 0.0
      %1910 = vmatmul.mubr.f32.gmra.mrb[0].mxu0 %v1664
      %v1911 = vpop.f32.mrb[0].mxu0
      %v1912 = vadd.f32 0.0, %v1911
      %v1913 = vpop.f32.mrb[0].mxu0
      %1914 = vmatprep.mubr.f32.mxu0 0.0
      %1915 = vmatmul.mubr.f32.gmra.mrb[0].mxu0 %v1667
      %v1916 = vpop.f32.mrb[0].mxu0
      %v1917 = vadd.f32 0.0, %v1916
      %v1918 = vpop.f32.mrb[0].mxu0
      %1919 = vmatprep.mubr.f32.mxu0 0.0
      %1920 = vmatmul.mubr.f32.gmra.mrb[0].mxu0 %v1670
      %v1921 = vpop.f32.mrb[0].mxu0
      %v1922 = vadd.f32 0.0, %v1921
      %v1923 = vpop.f32.mrb[0].mxu0
      %1924 = vmatprep.mubr.f32.mxu0 0.0
      %1925 = vmatmul.mubr.f32.gmra.mrb[0].mxu0 %v1673
      %v1926 = vpop.f32.mrb[0].mxu0
      %v1927 = vadd.f32 0.0, %v1926
      %v1928 = vpop.f32.mrb[0].mxu0
      %1929 = vmatprep.mubr.f32.mxu0 0.0
      %1930 = vmatmul.mubr.f32.gmra.mrb[0].mxu0 %v1676
      %v1931 = vpop.f32.mrb[0].mxu0
      %v1932 = vadd.f32 0.0, %v1931
      %v1933 = vpop.f32.mrb[0].mxu0
      %1934 = vmatprep.mubr.f32.mxu0 0.0
      %1935 = vmatmul.mubr.f32.gmra.mrb[0].mxu0 %v1679
      %v1936 = vpop.f32.mrb[0].mxu0
      %v1937 = vadd.f32 0.0, %v1936
      %v1938 = vpop.f32.mrb[0].mxu0
      %1939 = vmatprep.mubr.f32.mxu0 0.0
      %1940 = vmatmul.mubr.f32.gmra.mrb[0].mxu0 %v1682
      %v1941 = vpop.f32.mrb[0].mxu0
      %v1942 = vadd.f32 0.0, %v1941
      %v1943 = vpop.f32.mrb[0].mxu0
      %1944 = vmatprep.mubr.f32.mxu0 0.0
      %1945 = vmatmul.mubr.f32.gmra.mrb[0].mxu0 %v1685
      %v1946 = vpop.f32.mrb[0].mxu0
      %v1947 = vadd.f32 0.0, %v1946
      %v1948 = vpop.f32.mrb[0].mxu0
      %1949 = vdwg.mxu0
      %v1950 = vadd.f32 %v1489, %v1757
      %v1951 = vadd.f32 %v1490, %v1762
      %v1952 = vadd.f32 %v1491, %v1767
      %v1953 = vadd.f32 %v1492, %v1772
      %v1954 = vadd.f32 %v1493, %v1777
      %v1955 = vadd.f32 %v1494, %v1782
      %v1956 = vadd.f32 %v1495, %v1787
      %v1957 = vadd.f32 %v1496, %v1792
      %v1958 = vadd.f32 %v1497, %v1797
      %v1959 = vadd.f32 %v1498, %v1802
      %v1960 = vadd.f32 %v1499, %v1807
      %v1961 = vadd.f32 %v1500, %v1812
      %v1962 = vadd.f32 %v1501, %v1817
      %v1963 = vadd.f32 %v1502, %v1822
      %v1964 = vadd.f32 %v1503, %v1827
      %v1965 = vadd.f32 %v1504, %v1832
      %v1966 = vadd.f32 %v1505, %v1837
      %v1967 = vadd.f32 %v1506, %v1842
      %v1968 = vadd.f32 %v1507, %v1847
      %v1969 = vadd.f32 %v1508, %v1852
      %v1970 = vadd.f32 %v1509, %v1857
      %v1971 = vadd.f32 %v1510, %v1862
      %v1972 = vadd.f32 %v1511, %v1867
      %v1973 = vadd.f32 %v1512, %v1872
      %v1974 = vadd.f32 %v1513, %v1877
      %v1975 = vadd.f32 %v1514, %v1882
      %v1976 = vadd.f32 %v1515, %v1887
      %v1977 = vadd.f32 %v1516, %v1892
      %v1978 = vadd.f32 %v1517, %v1897
      %v1979 = vadd.f32 %v1518, %v1902
      %v1980 = vadd.f32 %v1519, %v1907
      %v1981 = vadd.f32 %v1520, %v1912
      %v1982 = vadd.f32 %v1521, %v1917
      %v1983 = vadd.f32 %v1522, %v1922
      %v1984 = vadd.f32 %v1523, %v1927
      %v1985 = vadd.f32 %v1524, %v1932
      %v1986 = vadd.f32 %v1525, %v1937
      %v1987 = vadd.f32 %v1526, %v1942
      %v1988 = vadd.f32 %v1527, %v1947
      %v1989 = vld [vmem:[%s213] sm:$0x1]
      %v1991 = vlaneseq
      %v1992 = vshrl.u32 %v1991, 7
      %v1993 = vsub.s32 0, %v1992
      %v1994 = vrot.slane %v1989, %v1993
      %v1996 = vadd.f32 %v1950, %v1994
      %v1997 = vadd.f32 %v1951, %v1994
      %v1998 = vadd.f32 %v1952, %v1994
      %v1999 = vadd.f32 %v1953, %v1994
      %v2000 = vadd.f32 %v1954, %v1994
      %v2001 = vadd.f32 %v1955, %v1994
      %v2002 = vadd.f32 %v1956, %v1994
      %v2003 = vadd.f32 %v1957, %v1994
      %v2004 = vadd.f32 %v1958, %v1994
      %v2005 = vadd.f32 %v1959, %v1994
      %v2006 = vadd.f32 %v1960, %v1994
      %v2007 = vadd.f32 %v1961, %v1994
      %v2008 = vadd.f32 %v1962, %v1994
      %v2009 = vadd.f32 %v1963, %v1994
      %v2010 = vadd.f32 %v1964, %v1994
      %v2011 = vadd.f32 %v1965, %v1994
      %v2012 = vadd.f32 %v1966, %v1994
      %v2013 = vadd.f32 %v1967, %v1994
      %v2014 = vadd.f32 %v1968, %v1994
      %v2015 = vadd.f32 %v1969, %v1994
      %v2016 = vadd.f32 %v1970, %v1994
      %v2017 = vadd.f32 %v1971, %v1994
      %v2018 = vadd.f32 %v1972, %v1994
      %v2019 = vadd.f32 %v1973, %v1994
      %v2020 = vadd.f32 %v1974, %v1994
      %v2021 = vadd.f32 %v1975, %v1994
      %v2022 = vadd.f32 %v1976, %v1994
      %v2023 = vadd.f32 %v1977, %v1994
      %v2024 = vadd.f32 %v1978, %v1994
      %v2025 = vadd.f32 %v1979, %v1994
      %v2026 = vadd.f32 %v1980, %v1994
      %v2027 = vadd.f32 %v1981, %v1994
      %v2028 = vadd.f32 %v1982, %v1994
      %v2029 = vadd.f32 %v1983, %v1994
      %v2030 = vadd.f32 %v1984, %v1994
      %v2031 = vadd.f32 %v1985, %v1994
      %v2032 = vadd.f32 %v1986, %v1994
      %v2033 = vadd.f32 %v1987, %v1994
      %v2034 = vadd.f32 %v1988, %v1994
      %vm2035 = vcmp.ge.f32.partialorder %v1996, 0.0
      %vm2036 = vcmp.ge.f32.partialorder %v1997, 0.0
      %vm2037 = vcmp.ge.f32.partialorder %v1998, 0.0
      %vm2038 = vcmp.ge.f32.partialorder %v1999, 0.0
      %vm2039 = vcmp.ge.f32.partialorder %v2000, 0.0
      %vm2040 = vcmp.ge.f32.partialorder %v2001, 0.0
      %vm2041 = vcmp.ge.f32.partialorder %v2002, 0.0
      %vm2042 = vcmp.ge.f32.partialorder %v2003, 0.0
      %vm2043 = vcmp.ge.f32.partialorder %v2004, 0.0
      %vm2044 = vcmp.ge.f32.partialorder %v2005, 0.0
      %vm2045 = vcmp.ge.f32.partialorder %v2006, 0.0
      %vm2046 = vcmp.ge.f32.partialorder %v2007, 0.0
      %vm2047 = vcmp.ge.f32.partialorder %v2008, 0.0
      %vm2048 = vcmp.ge.f32.partialorder %v2009, 0.0
      %vm2049 = vcmp.ge.f32.partialorder %v2010, 0.0
      %vm2050 = vcmp.ge.f32.partialorder %v2011, 0.0
      %vm2051 = vcmp.ge.f32.partialorder %v2012, 0.0
      %vm2052 = vcmp.ge.f32.partialorder %v2013, 0.0
      %vm2053 = vcmp.ge.f32.partialorder %v2014, 0.0
      %vm2054 = vcmp.ge.f32.partialorder %v2015, 0.0
      %vm2055 = vcmp.ge.f32.partialorder %v2016, 0.0
      %vm2056 = vcmp.ge.f32.partialorder %v2017, 0.0
      %vm2057 = vcmp.ge.f32.partialorder %v2018, 0.0
      %vm2058 = vcmp.ge.f32.partialorder %v2019, 0.0
      %vm2059 = vcmp.ge.f32.partialorder %v2020, 0.0
      %vm2060 = vcmp.ge.f32.partialorder %v2021, 0.0
      %vm2061 = vcmp.ge.f32.partialorder %v2022, 0.0
      %vm2062 = vcmp.ge.f32.partialorder %v2023, 0.0
      %vm2063 = vcmp.ge.f32.partialorder %v2024, 0.0
      %vm2064 = vcmp.ge.f32.partialorder %v2025, 0.0
      %vm2065 = vcmp.ge.f32.partialorder %v2026, 0.0
      %vm2066 = vcmp.ge.f32.partialorder %v2027, 0.0
      %vm2067 = vcmp.ge.f32.partialorder %v2028, 0.0
      %vm2068 = vcmp.ge.f32.partialorder %v2029, 0.0
      %vm2069 = vcmp.ge.f32.partialorder %v2030, 0.0
      %vm2070 = vcmp.ge.f32.partialorder %v2031, 0.0
      %vm2071 = vcmp.ge.f32.partialorder %v2032, 0.0
      %vm2072 = vcmp.ge.f32.partialorder %v2033, 0.0
      %vm2073 = vcmp.ge.f32.partialorder %v2034, 0.0
      %v2074 = vmul.f32 %v1996, 0.2
      %v2075 = vmul.f32 %v1997, 0.2
      %v2076 = vmul.f32 %v1998, 0.2
      %v2077 = vmul.f32 %v1999, 0.2
      %v2078 = vmul.f32 %v2000, 0.2
      %v2079 = vmul.f32 %v2001, 0.2
      %v2080 = vmul.f32 %v2002, 0.2
      %v2081 = vmul.f32 %v2003, 0.2
      %v2082 = vmul.f32 %v2004, 0.2
      %v2083 = vmul.f32 %v2005, 0.2
      %v2084 = vmul.f32 %v2006, 0.2
      %v2085 = vmul.f32 %v2007, 0.2
      %v2086 = vmul.f32 %v2008, 0.2
      %v2087 = vmul.f32 %v2009, 0.2
      %v2088 = vmul.f32 %v2010, 0.2
      %v2089 = vmul.f32 %v2011, 0.2
      %v2090 = vmul.f32 %v2012, 0.2
      %v2091 = vmul.f32 %v2013, 0.2
      %v2092 = vmul.f32 %v2014, 0.2
      %v2093 = vmul.f32 %v2015, 0.2
      %v2094 = vmul.f32 %v2016, 0.2
      %v2095 = vmul.f32 %v2017, 0.2
      %v2096 = vmul.f32 %v2018, 0.2
      %v2097 = vmul.f32 %v2019, 0.2
      %v2098 = vmul.f32 %v2020, 0.2
      %v2099 = vmul.f32 %v2021, 0.2
      %v2100 = vmul.f32 %v2022, 0.2
      %v2101 = vmul.f32 %v2023, 0.2
      %v2102 = vmul.f32 %v2024, 0.2
      %v2103 = vmul.f32 %v2025, 0.2
      %v2104 = vmul.f32 %v2026, 0.2
      %v2105 = vmul.f32 %v2027, 0.2
      %v2106 = vmul.f32 %v2028, 0.2
      %v2107 = vmul.f32 %v2029, 0.2
      %v2108 = vmul.f32 %v2030, 0.2
      %v2109 = vmul.f32 %v2031, 0.2
      %v2110 = vmul.f32 %v2032, 0.2
      %v2111 = vmul.f32 %v2033, 0.2
      %v2112 = vmul.f32 %v2034, 0.2
      %v2113 = vsel %vm2035, %v1996, %v2074
      %v2114 = vsel %vm2036, %v1997, %v2075
      %v2115 = vsel %vm2037, %v1998, %v2076
      %v2116 = vsel %vm2038, %v1999, %v2077
      %v2117 = vsel %vm2039, %v2000, %v2078
      %v2118 = vsel %vm2040, %v2001, %v2079
      %v2119 = vsel %vm2041, %v2002, %v2080
      %v2120 = vsel %vm2042, %v2003, %v2081
      %v2121 = vsel %vm2043, %v2004, %v2082
      %v2122 = vsel %vm2044, %v2005, %v2083
      %v2123 = vsel %vm2045, %v2006, %v2084
      %v2124 = vsel %vm2046, %v2007, %v2085
      %v2125 = vsel %vm2047, %v2008, %v2086
      %v2126 = vsel %vm2048, %v2009, %v2087
      %v2127 = vsel %vm2049, %v2010, %v2088
      %v2128 = vsel %vm2050, %v2011, %v2089
      %v2129 = vsel %vm2051, %v2012, %v2090
      %v2130 = vsel %vm2052, %v2013, %v2091
      %v2131 = vsel %vm2053, %v2014, %v2092
      %v2132 = vsel %vm2054, %v2015, %v2093
      %v2133 = vsel %vm2055, %v2016, %v2094
      %v2134 = vsel %vm2056, %v2017, %v2095
      %v2135 = vsel %vm2057, %v2018, %v2096
      %v2136 = vsel %vm2058, %v2019, %v2097
      %v2137 = vsel %vm2059, %v2020, %v2098
      %v2138 = vsel %vm2060, %v2021, %v2099
      %v2139 = vsel %vm2061, %v2022, %v2100
      %v2140 = vsel %vm2062, %v2023, %v2101
      %v2141 = vsel %vm2063, %v2024, %v2102
      %v2142 = vsel %vm2064, %v2025, %v2103
      %v2143 = vsel %vm2065, %v2026, %v2104
      %v2144 = vsel %vm2066, %v2027, %v2105
      %v2145 = vsel %vm2067, %v2028, %v2106
      %v2146 = vsel %vm2068, %v2029, %v2107
      %v2147 = vsel %vm2069, %v2030, %v2108
      %v2148 = vsel %vm2070, %v2031, %v2109
      %v2149 = vsel %vm2071, %v2032, %v2110
      %v2150 = vsel %vm2072, %v2033, %v2111
      %v2151 = vsel %vm2073, %v2034, %v2112
      %vm2152 = vcmask 64512
      %2153 = vst.msk [vmem:[%s221] sm:$0xff] %vm2152, %v2113
      %2154 = vst.msk [vmem:[%s221 + $0x8] sm:$0xff] %vm2152, %v2114
      %2155 = vst.msk [vmem:[%s221 + $0x10] sm:$0xff] %vm2152, %v2115
      %2156 = vst.msk [vmem:[%s221 + $0x18] sm:$0xff] %vm2152, %v2116
      %2157 = vst.msk [vmem:[%s221 + $0x20] sm:$0xff] %vm2152, %v2117
      %2158 = vst.msk [vmem:[%s221 + $0x28] sm:$0xff] %vm2152, %v2118
      %2159 = vst.msk [vmem:[%s221 + $0x30] sm:$0xff] %vm2152, %v2119
      %2160 = vst.msk [vmem:[%s221 + $0x38] sm:$0xff] %vm2152, %v2120
      %2161 = vst.msk [vmem:[%s221 + $0x40] sm:$0xff] %vm2152, %v2121
      %2162 = vst.msk [vmem:[%s221 + $0x48] sm:$0xff] %vm2152, %v2122
      %2163 = vst.msk [vmem:[%s221 + $0x50] sm:$0xff] %vm2152, %v2123
      %2164 = vst.msk [vmem:[%s221 + $0x58] sm:$0xff] %vm2152, %v2124
      %2165 = vst.msk [vmem:[%s221 + $0x60] sm:$0xff] %vm2152, %v2125
      %2166 = vst.msk [vmem:[%s221 + $0x68] sm:$0xff] %vm2152, %v2126
      %2167 = vst.msk [vmem:[%s221 + $0x70] sm:$0xff] %vm2152, %v2127
      %2168 = vst.msk [vmem:[%s221 + $0x78] sm:$0xff] %vm2152, %v2128
      %2169 = vst.msk [vmem:[%s221 + $0x80] sm:$0xff] %vm2152, %v2129
      %2170 = vst.msk [vmem:[%s221 + $0x88] sm:$0xff] %vm2152, %v2130
      %2171 = vst.msk [vmem:[%s221 + $0x90] sm:$0xff] %vm2152, %v2131
      %2172 = vst.msk [vmem:[%s221 + $0x98] sm:$0xff] %vm2152, %v2132
      %2173 = vst.msk [vmem:[%s221 + $0xa0] sm:$0xff] %vm2152, %v2133
      %2174 = vst.msk [vmem:[%s221 + $0xa8] sm:$0xff] %vm2152, %v2134
      %2175 = vst.msk [vmem:[%s221 + $0xb0] sm:$0xff] %vm2152, %v2135
      %2176 = vst.msk [vmem:[%s221 + $0xb8] sm:$0xff] %vm2152, %v2136
      %2177 = vst.msk [vmem:[%s221 + $0xc0] sm:$0xff] %vm2152, %v2137
      %2178 = vst.msk [vmem:[%s221 + $0xc8] sm:$0xff] %vm2152, %v2138
      %2179 = vst.msk [vmem:[%s221 + $0xd0] sm:$0xff] %vm2152, %v2139
      %2180 = vst.msk [vmem:[%s221 + $0xd8] sm:$0xff] %vm2152, %v2140
      %2181 = vst.msk [vmem:[%s221 + $0xe0] sm:$0xff] %vm2152, %v2141
      %2182 = vst.msk [vmem:[%s221 + $0xe8] sm:$0xff] %vm2152, %v2142
      %2183 = vst.msk [vmem:[%s221 + $0xf0] sm:$0xff] %vm2152, %v2143
      %2184 = vst.msk [vmem:[%s221 + $0xf8] sm:$0xff] %vm2152, %v2144
      %2185 = vst.msk [vmem:[%s221 + $0x100] sm:$0xff] %vm2152, %v2145
      %2186 = vst.msk [vmem:[%s221 + $0x108] sm:$0xff] %vm2152, %v2146
      %2187 = vst.msk [vmem:[%s221 + $0x110] sm:$0xff] %vm2152, %v2147
      %2188 = vst.msk [vmem:[%s221 + $0x118] sm:$0xff] %vm2152, %v2148
      %2189 = vst.msk [vmem:[%s221 + $0x120] sm:$0xff] %vm2152, %v2149
      %2190 = vst.msk [vmem:[%s221 + $0x128] sm:$0xff] %vm2152, %v2150
      %vm2191 = vcmask 58368
      %2192 = vst.msk [vmem:[%s221 + $0x130] sm:$0x3] %vm2191, %v2151
      %p2193 = scmp.lt.s32.totalorder %s18, 1
      %s2194 = scalar_select %p2193, %s18, 1
      %p2195 = scmp.lt.s32.totalorder %s19, 0
      %s2196 = scalar_select %p2195, %s19, 0
      %s2197 = smul.addr %s2194, 39
      %s2198 = sadd.s32 %s2196, %s2197
      %s2199 = smul.addr %s2198, 8
      %s2200 = scalar_lea.vmem %s3, %s2199
      // Predicated region
      $region33: #{tpu_custom_call.1} parent=31 // pred_check
        %p2201 = pneg %p124
      $region34: #{tpu_custom_call.1} parent=31 // pred_check_branch
        %2203 = sbr.rel (%p2201) target = $region36
      $region35: #{tpu_custom_call.1} parent=31 // pred_region
        _
      $region36: #{tpu_custom_call.1} parent=31 // pred_fallthru
        _
    $region32: #{tpu_custom_call.1} parent=5 // pred_fallthru
      _
    %p2204 = scmp.le.s32.totalorder 2, %s9
    // Predicated region
    $region37: #{tpu_custom_call.1} parent=5 // pred_check
      %p2205 = pneg %p2204
    $region38: #{tpu_custom_call.1} parent=5 // pred_check_branch
      %2207 = sbr.rel (%p2205) target = $region40
    $region39: #{tpu_custom_call.1} parent=5 // pred_region
      %s2208 = ssub.s32 %s9, 2
      // Predicated region
      $region41: #{tpu_custom_call.1} parent=39 // pred_check
        %p2209 = pneg %p130
      $region42: #{tpu_custom_call.1} parent=39 // pred_check_branch
        %2211 = sbr.rel (%p2209) target = $region44
      $region43: #{tpu_custom_call.1} parent=39 // pred_region
        %p2212 = scmp.lt.s32.totalorder %s20, 1
        %s2213 = scalar_select %p2212, %s20, 1
        %p2214 = scmp.lt.s32.totalorder %s21, 0
        %s2215 = scalar_select %p2214, %s21, 0
        %s2216 = smul.addr %s2213, 39
        %s2217 = sadd.s32 %s2215, %s2216
        %s2218 = smul.addr %s2217, 8
        %s2219 = scalar_lea.vmem %s3, %s2218
      $region44: #{tpu_custom_call.1} parent=39 // pred_fallthru
        _
    $region40: #{tpu_custom_call.1} parent=5 // pred_fallthru
      _
  $region6: #{tpu_custom_call.1} parent=0 // loop_footer
    %s13 = sadd.s32 1, %s9
  $region7: #{tpu_custom_call.1} parent=0 // loop_footer_branch
    %8 = sbr.rel target = $region3
  $region8: #{tpu_custom_call.1} parent=0 // loop_exit
    _

</llo_original>
